<compile_context>
chip_gen: v6e
topology: v6e:2x2x1
jax: 0.10.0
libtpu: 0.0.40
codegen_flags: <defaults>
</compile_context>

<pallas_src>
from functools import partial

import jax
import jax.numpy as jnp
from jax.experimental import pallas as pl
from jax.experimental.pallas import tpu as pltpu

HIDDEN = 128  # both internal 1x1 conv branches project to 128 channels


# ---------------------------------------------------------------------------
# Pallas kernel: one grid step == one batch sample
# ---------------------------------------------------------------------------
def _raspp_kernel(x_ref, f_ref, awT_ref, bh_ref,
                  w1_ref, b1_ref, w2_ref, b2_ref,
                  wo1_ref, bo1_ref, wo2_ref, bo2_ref,
                  out_ref, *, c_half, hx, wx, hf):
    x = x_ref[0]                                   # (Cx, Px) caller dtype
    xb = x.astype(jnp.bfloat16)                    # bf16 operand for the MXU
    fb = f_ref[0].astype(jnp.bfloat16)             # (Cf, Pf) bf16

    # --- layer1: 1x1 conv (BatchNorm folded) + ReLU6 -----------------------
    t1 = jnp.dot(w1_ref[...], xb, preferred_element_type=jnp.float32) + b1_ref[...]
    t1 = jnp.clip(t1, 0.0, 6.0)                    # (128, Px) f32

    # --- gate: AdaptiveAvgPool2d(1) -> layer2 -> Hardsigmoid ---------------
    # Lane reduce on the loaded tile (no full f32 temp is materialised).
    pooled = jnp.mean(x, axis=1, keepdims=True).astype(jnp.float32)   # (Cx, 1)
    g = jnp.dot(w2_ref[...], pooled, preferred_element_type=jnp.float32) + b2_ref[...]
    g = jnp.clip(g / 6.0 + 0.5, 0.0, 1.0)          # (128, 1) f32

    # F.interpolate of a 1x1 map == broadcast; gate the main branch.
    gated = (t1 * g).astype(jnp.bfloat16)          # (128, Px) bf16

    # --- out_conv1 commuted BEFORE the upsample (exact: both are linear) ---
    o1_low = jnp.dot(wo1_ref[...], gated,
                     preferred_element_type=jnp.float32)   # (c_half, Px) f32

    # --- separable bilinear upsample (Hx,Wx) -> (Hf,Wf), align_corners=False
    # relayout (c_half, Hx*Wx) -> (Hx*c_half, Wx); rows ordered (h, c)
    o1_s = jnp.concatenate(
        [o1_low[:, h * wx:(h + 1) * wx] for h in range(hx)], axis=0)
    # W-interp (bf16 MXU): (Hx*c_half, Wx) @ (Wx, Wf) -> (Hx*c_half, Wf)
    o1_w = jnp.dot(o1_s.astype(jnp.bfloat16), awT_ref[...],
                   preferred_element_type=jnp.float32)
    # H-interp (bf16 MXU): kron(A_h, I_c) @ ... -> (Hf*c_half, Wf)
    o1_hw = jnp.dot(bh_ref[...], o1_w.astype(jnp.bfloat16),
                    preferred_element_type=jnp.float32)
    # relayout (Hf*c_half, Wf) -> (c_half, Hf*Wf)
    o1_up = jnp.concatenate(
        [o1_hw[i * c_half:(i + 1) * c_half, :] for i in range(hf)], axis=1)
    o1_up = o1_up + bo1_ref[...]                   # (c_half, Pf) f32

    # --- out_conv2 on the skip feature --------------------------------------
    o2 = jnp.dot(wo2_ref[...], fb,
                 preferred_element_type=jnp.float32) + bo2_ref[...]  # (c_half, Pf)

    # --- torch.cat((out, feature), dim=1): one lane-dense full-block store --
    out_ref[0] = jnp.concatenate([o1_up, o2], axis=0).astype(out_ref.dtype)


# ---------------------------------------------------------------------------
# PyTorch-exact bilinear (align_corners=False) 1-D interpolation matrix
# ---------------------------------------------------------------------------
def _interp_matrix(out_size, in_size):
    i = jnp.arange(out_size, dtype=jnp.float32)
    src = (i + 0.5) * (in_size / out_size) - 0.5
    src = jnp.maximum(src, 0.0)                    # PyTorch clamps negative src
    i0 = jnp.minimum(jnp.floor(src).astype(jnp.int32), in_size - 1)
    i1 = jnp.minimum(i0 + 1, in_size - 1)
    w1 = src - i0.astype(jnp.float32)
    w0 = 1.0 - w1
    A = (w0[:, None] * jax.nn.one_hot(i0, in_size, dtype=jnp.float32)
         + w1[:, None] * jax.nn.one_hot(i1, in_size, dtype=jnp.float32))
    return A                                       # (out_size, in_size)


# ---------------------------------------------------------------------------
# Parameter init (deterministic kaiming-normal conv weights like _init_weight)
# Weights stored as (out, in); biases as (out, 1) columns.
# ---------------------------------------------------------------------------
def init_params(key, in_channels_x, in_channels_f, num_classes):
    assert num_classes % 2 == 0
    c_half = num_classes // 2
    ks = jax.random.split(key, 8)

    def kaiming(k, fan_out, fan_in):
        return jax.random.normal(k, (fan_out, fan_in), jnp.float32) * jnp.sqrt(2.0 / fan_in)

    def bias(k, fan_out, fan_in):
        bound = 1.0 / jnp.sqrt(fan_in)
        return jax.random.uniform(k, (fan_out, 1), jnp.float32, -bound, bound)

    w1 = kaiming(ks[0], HIDDEN, in_channels_x)
    b1 = bias(ks[1], HIDDEN, in_channels_x)
    # BatchNorm2d(128) folded in eval mode with default running stats
    # (mean=0, var=1, eps=1e-5), gamma=1, beta=0.
    # TODO(synk): fold real running stats into w1/b1 for a trained checkpoint.
    s = 1.0 / jnp.sqrt(1.0 + 1e-5)
    return dict(
        w1=(w1 * s).astype(jnp.bfloat16),
        b1=b1 * s,
        w2=kaiming(ks[2], HIDDEN, in_channels_x),       # f32: tiny gate path
        b2=bias(ks[3], HIDDEN, in_channels_x),
        wo1=kaiming(ks[4], c_half, HIDDEN).astype(jnp.bfloat16),
        bo1=bias(ks[5], c_half, HIDDEN),
        wo2=kaiming(ks[6], c_half, in_channels_f).astype(jnp.bfloat16),
        bo2=bias(ks[7], c_half, in_channels_f),
    )


def _pick_vmem_limit_bytes():
    # v5e/v6e: 128 MiB physical VMEM -> ~96 MiB scoped helps the DMA-bound
    # pipeline; v7x: 64 MiB physical -> ~48 MiB.  Fall back conservatively.
    try:
        phys = int(pltpu.get_tpu_info().vmem_capacity_bytes)
        return int(min(96 * 1024 * 1024, (phys * 3) // 4))
    except Exception:
        return 32 * 1024 * 1024


# ---------------------------------------------------------------------------
# Wrapper: NCHW in / NCHW out (only metadata reshapes on the host side)
# ---------------------------------------------------------------------------
def r_aspp_forward(x_nchw, feat_nchw, params):
    N, Cx, Hx, Wx = x_nchw.shape
    _, Cf, Hf, Wf = feat_nchw.shape
    c_half = params["wo1"].shape[0]
    num_classes = 2 * c_half
    Px, Pf = Hx * Wx, Hf * Wf

    # NCHW -> (N, C, H*W): pure metadata reshape. NO dtype cast pass here —
    # activations are cast to bf16 inside the kernel (feed bf16 from the
    # producer to halve the dominant HBM read).
    x = x_nchw.reshape(N, Cx, Px)
    f = feat_nchw.reshape(N, Cf, Pf)

    # Separable bilinear factors (exact factorisation of the dense kron).
    A_h = _interp_matrix(Hf, Hx)                                # (Hf, Hx)
    A_w = _interp_matrix(Wf, Wx)                                # (Wf, Wx)
    awT = jnp.asarray(A_w.T).astype(jnp.bfloat16)               # (Wx, Wf)
    bh = jnp.kron(A_h, jnp.eye(c_half, dtype=jnp.float32)).astype(jnp.bfloat16)

    def const(a):
        return pl.BlockSpec(a.shape, lambda n: (0,) * a.ndim)

    kern = partial(_raspp_kernel, c_half=c_half, hx=Hx, wx=Wx, hf=Hf)

    consts = (awT, bh, params["w1"], params["b1"], params["w2"], params["b2"],
              params["wo1"], params["bo1"], params["wo2"], params["bo2"])

    flops_per_sample = (
        2 * HIDDEN * Cx * Px                         # layer1 1x1 conv
        + Cx * Px                                    # global average pool
        + 2 * HIDDEN * Cx                            # gate 1x1 conv
        + 2 * c_half * HIDDEN * Px                   # out_conv1 (commuted)
        + 2 * (Hx * c_half) * Wx * Wf                # W-interp
        + 2 * (Hf * c_half) * (Hx * c_half) * Wf     # H-interp
        + 2 * c_half * Cf * Pf                       # out_conv2
    )
    bytes_accessed = (int(x.size) * x.dtype.itemsize
                      + int(f.size) * f.dtype.itemsize
                      + N * num_classes * Pf * 4
                      + sum(int(a.size) * a.dtype.itemsize for a in consts))
    cost = pl.CostEstimate(flops=int(N * flops_per_sample),
                           transcendentals=0,
                           bytes_accessed=int(bytes_accessed))

    out = pl.pallas_call(
        kern,
        out_shape=jax.ShapeDtypeStruct((N, num_classes, Pf), jnp.float32),
        grid_spec=pltpu.PrefetchScalarGridSpec(
            num_scalar_prefetch=0,
            grid=(N,),
            in_specs=[
                pl.BlockSpec((1, Cx, Px), lambda n: (n, 0, 0)),
                pl.BlockSpec((1, Cf, Pf), lambda n: (n, 0, 0)),
            ] + [const(a) for a in consts],
            out_specs=pl.BlockSpec((1, num_classes, Pf), lambda n: (n, 0, 0)),
        ),
        compiler_params=pltpu.CompilerParams(
            dimension_semantics=("parallel",),
            vmem_limit_bytes=_pick_vmem_limit_bytes(),
        ),
        cost_estimate=cost,
    )(x, f, *consts)

    # (N, num_classes, Hf*Wf) -> NCHW: pure reshape, no transpose.
    return out.reshape(N, num_classes, Hf, Wf)


# ---------------------------------------------------------------------------
# Pure-JAX reference (f32) for a tolerance check of the fused kernel
# ---------------------------------------------------------------------------
def _reference_forward(x, feat, params):
    f32 = jnp.float32
    w1, b1 = params["w1"].astype(f32), params["b1"]
    w2, b2 = params["w2"], params["b2"]
    wo1, bo1 = params["wo1"].astype(f32), params["bo1"]
    wo2, bo2 = params["wo2"].astype(f32), params["bo2"]
    _, _, Hx, Wx = x.shape
    _, _, Hf, Wf = feat.shape
    t1 = jnp.einsum("oc,nchw->nohw", w1, x) + b1.reshape(1, -1, 1, 1)
    t1 = jnp.clip(t1, 0.0, 6.0)
    pooled = jnp.mean(x, axis=(2, 3))
    g = jnp.einsum("oc,nc->no", w2, pooled) + b2.reshape(1, -1)
    g = jnp.clip(g / 6.0 + 0.5, 0.0, 1.0)
    gated = t1 * g[:, :, None, None]
    A_h = _interp_matrix(Hf, Hx)
    A_w = _interp_matrix(Wf, Wx)
    up = jnp.einsum("ih,jw,nchw->ncij", A_h, A_w, gated)
    o1 = jnp.einsum("oc,ncij->noij", wo1, up) + bo1.reshape(1, -1, 1, 1)
    o2 = jnp.einsum("oc,nchw->nohw", wo2, feat) + bo2.reshape(1, -1, 1, 1)
    return jnp.concatenate([o1, o2], axis=1)


if __name__ == "__main__":
    key = jax.random.PRNGKey(0)
    N, Cx, Cf, num_classes = 2, 8, 8, 8
    Hx = Wx = 8
    Hf = Wf = 16

    k_x, k_f, k_p = jax.random.split(key, 3)
    x = jax.random.normal(k_x, (N, Cx, Hx, Wx), jnp.float32)
    feature = jax.random.normal(k_f, (N, Cf, Hf, Wf), jnp.float32)
    params = init_params(k_p, Cx, Cf, num_classes)

    out = r_aspp_forward(x, feature, params)
    jax.block_until_ready(out)
    assert out.shape == (N, num_classes, Hf, Wf), out.shape
    assert out.dtype == jnp.float32

    ref = _reference_forward(x, feature, params)
    max_err = float(jnp.max(jnp.abs(out - ref)))
    # bf16 activations / interp matrices -> small, bounded mixed-precision error.
    assert max_err < 0.25, f"max abs error vs f32 reference: {max_err}"
    print("KERNEL_OK")
</pallas_src>

<mosaic_0001>
module attributes {stable_mosaic.version = 11 : i64} {
  func.func @_raspp_kernel(%arg0: i32, %arg1: memref<1x8x64xf32, #tpu.memory_space<vmem>>, %arg2: memref<1x8x256xf32, #tpu.memory_space<vmem>>, %arg3: memref<8x16xbf16, #tpu.memory_space<vmem>>, %arg4: memref<64x32xbf16, #tpu.memory_space<vmem>>, %arg5: memref<128x8xbf16, #tpu.memory_space<vmem>>, %arg6: memref<128x1xf32, #tpu.memory_space<vmem>>, %arg7: memref<128x8xf32, #tpu.memory_space<vmem>>, %arg8: memref<128x1xf32, #tpu.memory_space<vmem>>, %arg9: memref<4x128xbf16, #tpu.memory_space<vmem>>, %arg10: memref<4x1xf32, #tpu.memory_space<vmem>>, %arg11: memref<4x8xbf16, #tpu.memory_space<vmem>>, %arg12: memref<4x1xf32, #tpu.memory_space<vmem>>, %arg13: memref<1x8x256xf32, #tpu.memory_space<vmem>>) attributes {dimension_semantics = [#tpu.dimension_semantics<parallel>], iteration_bounds = array<i64: 2>, scalar_prefetch = 0 : i64, scratch_operands = 0 : i64, tpu.core_type = #tpu.core_type<tc>, window_params = [{transform_indices = @transform_0, window_bounds = array<i64: 1, 8, 64>}, {transform_indices = @transform_1, window_bounds = array<i64: 1, 8, 256>}, {pipeline_mode = #tpu.pipeline_mode<synchronous>, transform_indices = @transform_2, window_bounds = array<i64: 8, 16>}, {pipeline_mode = #tpu.pipeline_mode<synchronous>, transform_indices = @transform_3, window_bounds = array<i64: 64, 32>}, {pipeline_mode = #tpu.pipeline_mode<synchronous>, transform_indices = @transform_4, window_bounds = array<i64: 128, 8>}, {pipeline_mode = #tpu.pipeline_mode<synchronous>, transform_indices = @transform_5, window_bounds = array<i64: 128, 1>}, {pipeline_mode = #tpu.pipeline_mode<synchronous>, transform_indices = @transform_6, window_bounds = array<i64: 128, 8>}, {pipeline_mode = #tpu.pipeline_mode<synchronous>, transform_indices = @transform_7, window_bounds = array<i64: 128, 1>}, {pipeline_mode = #tpu.pipeline_mode<synchronous>, transform_indices = @transform_8, window_bounds = array<i64: 4, 128>}, {pipeline_mode = #tpu.pipeline_mode<synchronous>, transform_indices = @transform_9, window_bounds = array<i64: 4, 1>}, {pipeline_mode = #tpu.pipeline_mode<synchronous>, transform_indices = @transform_10, window_bounds = array<i64: 4, 8>}, {pipeline_mode = #tpu.pipeline_mode<synchronous>, transform_indices = @transform_11, window_bounds = array<i64: 4, 1>}, {transform_indices = @transform_12, window_bounds = array<i64: 1, 8, 256>}]} {
    %c0 = arith.constant 0 : index
    %c0_0 = arith.constant 0 : index
    %c0_1 = arith.constant 0 : index
    %0 = vector.load %arg1[%c0, %c0_0, %c0_1] : memref<1x8x64xf32, #tpu.memory_space<vmem>>, vector<1x8x64xf32>
    %1 = vector.shape_cast %0 : vector<1x8x64xf32> to vector<8x64xf32>
    %2 = arith.truncf %1 : vector<8x64xf32> to vector<8x64xbf16>
    %c0_2 = arith.constant 0 : index
    %c0_3 = arith.constant 0 : index
    %c0_4 = arith.constant 0 : index
    %3 = vector.load %arg2[%c0_2, %c0_3, %c0_4] : memref<1x8x256xf32, #tpu.memory_space<vmem>>, vector<1x8x256xf32>
    %4 = vector.shape_cast %3 : vector<1x8x256xf32> to vector<8x256xf32>
    %5 = arith.truncf %4 : vector<8x256xf32> to vector<8x256xbf16>
    %c0_5 = arith.constant 0 : index
    %c0_6 = arith.constant 0 : index
    %6 = vector.load %arg5[%c0_5, %c0_6] : memref<128x8xbf16, #tpu.memory_space<vmem>>, vector<128x8xbf16>
    %cst = arith.constant dense<0.000000e+00> : vector<128x64xf32>
    %7 = tpu.matmul %6, %2, %cst {dimension_numbers = #tpu.dot_dimension_numbers<[1], [0], [0], [1], [0, 0, 1, 1], [], []>} : vector<128x8xbf16>, vector<8x64xbf16>, vector<128x64xf32> -> vector<128x64xf32>
    %c0_7 = arith.constant 0 : index
    %c0_8 = arith.constant 0 : index
    %8 = vector.load %arg6[%c0_7, %c0_8] : memref<128x1xf32, #tpu.memory_space<vmem>>, vector<128x1xf32>
    %9 = vector.broadcast %8 : vector<128x1xf32> to vector<128x64xf32>
    %10 = arith.addf %7, %9 : vector<128x64xf32>
    %cst_9 = arith.constant 0.000000e+00 : f32
    %cst_10 = arith.constant 6.000000e+00 : f32
    %11 = vector.broadcast %cst_9 : f32 to vector<128x64xf32>
    %12 = arith.maximumf %11, %10 : vector<128x64xf32>
    %13 = vector.broadcast %cst_10 : f32 to vector<128x64xf32>
    %14 = arith.minimumf %13, %12 : vector<128x64xf32>
    %cst_11 = arith.constant dense<0.000000e+00> : vector<8xf32>
    %15 = vector.multi_reduction <add>, %1, %cst_11 [1] : vector<8x64xf32> to vector<8xf32>
    %16 = vector.shape_cast %15 : vector<8xf32> to vector<8x1xf32>
    %cst_12 = arith.constant 6.400000e+01 : f32
    %17 = vector.broadcast %cst_12 : f32 to vector<8x1xf32>
    %18 = arith.divf %16, %17 : vector<8x1xf32>
    %c0_13 = arith.constant 0 : index
    %c0_14 = arith.constant 0 : index
    %19 = vector.load %arg7[%c0_13, %c0_14] : memref<128x8xf32, #tpu.memory_space<vmem>>, vector<128x8xf32>
    %cst_15 = arith.constant dense<0.000000e+00> : vector<128x1xf32>
    %20 = tpu.matmul %19, %18, %cst_15 {dimension_numbers = #tpu.dot_dimension_numbers<[1], [0], [0], [1], [0, 0, 1, 1], [], []>} : vector<128x8xf32>, vector<8x1xf32>, vector<128x1xf32> -> vector<128x1xf32>
    %c0_16 = arith.constant 0 : index
    %c0_17 = arith.constant 0 : index
    %21 = vector.load %arg8[%c0_16, %c0_17] : memref<128x1xf32, #tpu.memory_space<vmem>>, vector<128x1xf32>
    %22 = arith.addf %20, %21 : vector<128x1xf32>
    %cst_18 = arith.constant 6.000000e+00 : f32
    %23 = vector.broadcast %cst_18 : f32 to vector<128x1xf32>
    %24 = arith.divf %22, %23 : vector<128x1xf32>
    %cst_19 = arith.constant 5.000000e-01 : f32
    %25 = vector.broadcast %cst_19 : f32 to vector<128x1xf32>
    %26 = arith.addf %24, %25 : vector<128x1xf32>
    %cst_20 = arith.constant 0.000000e+00 : f32
    %cst_21 = arith.constant 1.000000e+00 : f32
    %27 = vector.broadcast %cst_20 : f32 to vector<128x1xf32>
    %28 = arith.maximumf %27, %26 : vector<128x1xf32>
    %29 = vector.broadcast %cst_21 : f32 to vector<128x1xf32>
    %30 = arith.minimumf %29, %28 : vector<128x1xf32>
    %31 = vector.broadcast %30 : vector<128x1xf32> to vector<128x64xf32>
    %32 = arith.mulf %14, %31 : vector<128x64xf32>
    %33 = arith.truncf %32 : vector<128x64xf32> to vector<128x64xbf16>
    %c0_22 = arith.constant 0 : index
    %c0_23 = arith.constant 0 : index
    %34 = vector.load %arg9[%c0_22, %c0_23] : memref<4x128xbf16, #tpu.memory_space<vmem>>, vector<4x128xbf16>
    %cst_24 = arith.constant dense<0.000000e+00> : vector<4x64xf32>
    %35 = tpu.matmul %34, %33, %cst_24 {dimension_numbers = #tpu.dot_dimension_numbers<[1], [0], [0], [1], [0, 0, 1, 1], [], []>} : vector<4x128xbf16>, vector<128x64xbf16>, vector<4x64xf32> -> vector<4x64xf32>
    %36 = vector.extract_strided_slice %35 {offsets = [0, 0], sizes = [4, 8], strides = [1, 1]} : vector<4x64xf32> to vector<4x8xf32>
    %37 = vector.extract_strided_slice %35 {offsets = [0, 8], sizes = [4, 8], strides = [1, 1]} : vector<4x64xf32> to vector<4x8xf32>
    %38 = vector.extract_strided_slice %35 {offsets = [0, 16], sizes = [4, 8], strides = [1, 1]} : vector<4x64xf32> to vector<4x8xf32>
    %39 = vector.extract_strided_slice %35 {offsets = [0, 24], sizes = [4, 8], strides = [1, 1]} : vector<4x64xf32> to vector<4x8xf32>
    %40 = vector.extract_strided_slice %35 {offsets = [0, 32], sizes = [4, 8], strides = [1, 1]} : vector<4x64xf32> to vector<4x8xf32>
    %41 = vector.extract_strided_slice %35 {offsets = [0, 40], sizes = [4, 8], strides = [1, 1]} : vector<4x64xf32> to vector<4x8xf32>
    %42 = vector.extract_strided_slice %35 {offsets = [0, 48], sizes = [4, 8], strides = [1, 1]} : vector<4x64xf32> to vector<4x8xf32>
    %43 = vector.extract_strided_slice %35 {offsets = [0, 56], sizes = [4, 8], strides = [1, 1]} : vector<4x64xf32> to vector<4x8xf32>
    %44 = tpu.concatenate %36, %37, %38, %39, %40, %41, %42, %43 in 0 : vector<4x8xf32>, vector<4x8xf32>, vector<4x8xf32>, vector<4x8xf32>, vector<4x8xf32>, vector<4x8xf32>, vector<4x8xf32>, vector<4x8xf32> -> vector<32x8xf32>
    %45 = arith.truncf %44 : vector<32x8xf32> to vector<32x8xbf16>
    %c0_25 = arith.constant 0 : index
    %c0_26 = arith.constant 0 : index
    %46 = vector.load %arg3[%c0_25, %c0_26] : memref<8x16xbf16, #tpu.memory_space<vmem>>, vector<8x16xbf16>
    %cst_27 = arith.constant dense<0.000000e+00> : vector<32x16xf32>
    %47 = tpu.matmul %45, %46, %cst_27 {dimension_numbers = #tpu.dot_dimension_numbers<[1], [0], [0], [1], [0, 0, 1, 1], [], []>} : vector<32x8xbf16>, vector<8x16xbf16>, vector<32x16xf32> -> vector<32x16xf32>
    %c0_28 = arith.constant 0 : index
    %c0_29 = arith.constant 0 : index
    %48 = vector.load %arg4[%c0_28, %c0_29] : memref<64x32xbf16, #tpu.memory_space<vmem>>, vector<64x32xbf16>
    %49 = arith.truncf %47 : vector<32x16xf32> to vector<32x16xbf16>
    %cst_30 = arith.constant dense<0.000000e+00> : vector<64x16xf32>
    %50 = tpu.matmul %48, %49, %cst_30 {dimension_numbers = #tpu.dot_dimension_numbers<[1], [0], [0], [1], [0, 0, 1, 1], [], []>} : vector<64x32xbf16>, vector<32x16xbf16>, vector<64x16xf32> -> vector<64x16xf32>
    %51 = vector.extract_strided_slice %50 {offsets = [0, 0], sizes = [4, 16], strides = [1, 1]} : vector<64x16xf32> to vector<4x16xf32>
    %52 = vector.extract_strided_slice %50 {offsets = [4, 0], sizes = [4, 16], strides = [1, 1]} : vector<64x16xf32> to vector<4x16xf32>
    %53 = vector.extract_strided_slice %50 {offsets = [8, 0], sizes = [4, 16], strides = [1, 1]} : vector<64x16xf32> to vector<4x16xf32>
    %54 = vector.extract_strided_slice %50 {offsets = [12, 0], sizes = [4, 16], strides = [1, 1]} : vector<64x16xf32> to vector<4x16xf32>
    %55 = vector.extract_strided_slice %50 {offsets = [16, 0], sizes = [4, 16], strides = [1, 1]} : vector<64x16xf32> to vector<4x16xf32>
    %56 = vector.extract_strided_slice %50 {offsets = [20, 0], sizes = [4, 16], strides = [1, 1]} : vector<64x16xf32> to vector<4x16xf32>
    %57 = vector.extract_strided_slice %50 {offsets = [24, 0], sizes = [4, 16], strides = [1, 1]} : vector<64x16xf32> to vector<4x16xf32>
    %58 = vector.extract_strided_slice %50 {offsets = [28, 0], sizes = [4, 16], strides = [1, 1]} : vector<64x16xf32> to vector<4x16xf32>
    %59 = vector.extract_strided_slice %50 {offsets = [32, 0], sizes = [4, 16], strides = [1, 1]} : vector<64x16xf32> to vector<4x16xf32>
    %60 = vector.extract_strided_slice %50 {offsets = [36, 0], sizes = [4, 16], strides = [1, 1]} : vector<64x16xf32> to vector<4x16xf32>
    %61 = vector.extract_strided_slice %50 {offsets = [40, 0], sizes = [4, 16], strides = [1, 1]} : vector<64x16xf32> to vector<4x16xf32>
    %62 = vector.extract_strided_slice %50 {offsets = [44, 0], sizes = [4, 16], strides = [1, 1]} : vector<64x16xf32> to vector<4x16xf32>
    %63 = vector.extract_strided_slice %50 {offsets = [48, 0], sizes = [4, 16], strides = [1, 1]} : vector<64x16xf32> to vector<4x16xf32>
    %64 = vector.extract_strided_slice %50 {offsets = [52, 0], sizes = [4, 16], strides = [1, 1]} : vector<64x16xf32> to vector<4x16xf32>
    %65 = vector.extract_strided_slice %50 {offsets = [56, 0], sizes = [4, 16], strides = [1, 1]} : vector<64x16xf32> to vector<4x16xf32>
    %66 = vector.extract_strided_slice %50 {offsets = [60, 0], sizes = [4, 16], strides = [1, 1]} : vector<64x16xf32> to vector<4x16xf32>
    %67 = tpu.concatenate %51, %52, %53, %54, %55, %56, %57, %58, %59, %60, %61, %62, %63, %64, %65, %66 in 1 : vector<4x16xf32>, vector<4x16xf32>, vector<4x16xf32>, vector<4x16xf32>, vector<4x16xf32>, vector<4x16xf32>, vector<4x16xf32>, vector<4x16xf32>, vector<4x16xf32>, vector<4x16xf32>, vector<4x16xf32>, vector<4x16xf32>, vector<4x16xf32>, vector<4x16xf32>, vector<4x16xf32>, vector<4x16xf32> -> vector<4x256xf32>
    %c0_31 = arith.constant 0 : index
    %c0_32 = arith.constant 0 : index
    %68 = vector.load %arg10[%c0_31, %c0_32] : memref<4x1xf32, #tpu.memory_space<vmem>>, vector<4x1xf32>
    %69 = vector.broadcast %68 : vector<4x1xf32> to vector<4x256xf32>
    %70 = arith.addf %67, %69 : vector<4x256xf32>
    %c0_33 = arith.constant 0 : index
    %c0_34 = arith.constant 0 : index
    %71 = vector.load %arg11[%c0_33, %c0_34] : memref<4x8xbf16, #tpu.memory_space<vmem>>, vector<4x8xbf16>
    %cst_35 = arith.constant dense<0.000000e+00> : vector<4x256xf32>
    %72 = tpu.matmul %71, %5, %cst_35 {dimension_numbers = #tpu.dot_dimension_numbers<[1], [0], [0], [1], [0, 0, 1, 1], [], []>} : vector<4x8xbf16>, vector<8x256xbf16>, vector<4x256xf32> -> vector<4x256xf32>
    %c0_36 = arith.constant 0 : index
    %c0_37 = arith.constant 0 : index
    %73 = vector.load %arg12[%c0_36, %c0_37] : memref<4x1xf32, #tpu.memory_space<vmem>>, vector<4x1xf32>
    %74 = vector.broadcast %73 : vector<4x1xf32> to vector<4x256xf32>
    %75 = arith.addf %72, %74 : vector<4x256xf32>
    %76 = tpu.concatenate %70, %75 in 0 : vector<4x256xf32>, vector<4x256xf32> -> vector<8x256xf32>
    %c0_38 = arith.constant 0 : index
    %c0_39 = arith.constant 0 : index
    %c0_40 = arith.constant 0 : index
    %77 = vector.load %arg13[%c0_38, %c0_39, %c0_40] : memref<1x8x256xf32, #tpu.memory_space<vmem>>, vector<1x8x256xf32>
    %78 = vector.shape_cast %77 : vector<1x8x256xf32> to vector<8x256xf32>
    %79 = vector.shape_cast %76 : vector<8x256xf32> to vector<1x8x256xf32>
    tpu.vector_store %arg13[%c0_38, %c0_39, %c0_40], %79 {strides = array<i32>} : memref<1x8x256xf32, #tpu.memory_space<vmem>>, vector<1x8x256xf32>,
    return
  }
  func.func @transform_0(%arg0: i32) -> (i32, i32, i32) {
    %c0_i32 = arith.constant 0 : i32
    %c0_i32_0 = arith.constant 0 : i32
    %c0_i32_1 = arith.constant 0 : i32
    return %arg0, %c0_i32, %c0_i32_0 : i32, i32, i32
  }
  func.func @transform_1(%arg0: i32) -> (i32, i32, i32) {
    %c0_i32 = arith.constant 0 : i32
    %c0_i32_0 = arith.constant 0 : i32
    %c0_i32_1 = arith.constant 0 : i32
    return %arg0, %c0_i32, %c0_i32_0 : i32, i32, i32
  }
  func.func @transform_2(%arg0: i32) -> (i32, i32) {
    %c0_i32 = arith.constant 0 : i32
    %c0_i32_0 = arith.constant 0 : i32
    %c0_i32_1 = arith.constant 0 : i32
    return %c0_i32, %c0_i32_0 : i32, i32
  }
  func.func @transform_3(%arg0: i32) -> (i32, i32) {
    %c0_i32 = arith.constant 0 : i32
    %c0_i32_0 = arith.constant 0 : i32
    %c0_i32_1 = arith.constant 0 : i32
    return %c0_i32, %c0_i32_0 : i32, i32
  }
  func.func @transform_4(%arg0: i32) -> (i32, i32) {
    %c0_i32 = arith.constant 0 : i32
    %c0_i32_0 = arith.constant 0 : i32
    %c0_i32_1 = arith.constant 0 : i32
    return %c0_i32, %c0_i32_0 : i32, i32
  }
  func.func @transform_5(%arg0: i32) -> (i32, i32) {
    %c0_i32 = arith.constant 0 : i32
    %c0_i32_0 = arith.constant 0 : i32
    %c0_i32_1 = arith.constant 0 : i32
    return %c0_i32, %c0_i32_0 : i32, i32
  }
  func.func @transform_6(%arg0: i32) -> (i32, i32) {
    %c0_i32 = arith.constant 0 : i32
    %c0_i32_0 = arith.constant 0 : i32
    %c0_i32_1 = arith.constant 0 : i32
    return %c0_i32, %c0_i32_0 : i32, i32
  }
  func.func @transform_7(%arg0: i32) -> (i32, i32) {
    %c0_i32 = arith.constant 0 : i32
    %c0_i32_0 = arith.constant 0 : i32
    %c0_i32_1 = arith.constant 0 : i32
    return %c0_i32, %c0_i32_0 : i32, i32
  }
  func.func @transform_8(%arg0: i32) -> (i32, i32) {
    %c0_i32 = arith.constant 0 : i32
    %c0_i32_0 = arith.constant 0 : i32
    %c0_i32_1 = arith.constant 0 : i32
    return %c0_i32, %c0_i32_0 : i32, i32
  }
  func.func @transform_9(%arg0: i32) -> (i32, i32) {
    %c0_i32 = arith.constant 0 : i32
    %c0_i32_0 = arith.constant 0 : i32
    %c0_i32_1 = arith.constant 0 : i32
    return %c0_i32, %c0_i32_0 : i32, i32
  }
  func.func @transform_10(%arg0: i32) -> (i32, i32) {
    %c0_i32 = arith.constant 0 : i32
    %c0_i32_0 = arith.constant 0 : i32
    %c0_i32_1 = arith.constant 0 : i32
    return %c0_i32, %c0_i32_0 : i32, i32
  }
  func.func @transform_11(%arg0: i32) -> (i32, i32) {
    %c0_i32 = arith.constant 0 : i32
    %c0_i32_0 = arith.constant 0 : i32
    %c0_i32_1 = arith.constant 0 : i32
    return %c0_i32, %c0_i32_0 : i32, i32
  }
  func.func @transform_12(%arg0: i32) -> (i32, i32, i32) {
    %c0_i32 = arith.constant 0 : i32
    %c0_i32_0 = arith.constant 0 : i32
    %c0_i32_1 = arith.constant 0 : i32
    return %arg0, %c0_i32, %c0_i32_0 : i32, i32, i32
  }
}

</mosaic_0001>

<llo_original>
// kernel: tpu_custom_call.1
$region0: #{tpu_custom_call.1}
  #allocation0 [shape = 'u32[]', space=smem, size = 0x4, offset = 0x4, fixed_abs, tag = 'smem constant byte address 0x4 - core index']
  #allocation1 [shape = 'u32[144,128]{1,0:T(1,128)}', space=vmem, size = 0x12000, scoped, tag = 'internal scratch']
  %s0 = inlined_call_operand.vmem [shape: f32[2,8,64], index: 0, kind: input, shape index: {}]
  %s1 = inlined_call_operand.vmem [shape: f32[2,8,256], index: 1, kind: input, shape index: {}]
  %s2 = inlined_call_operand.vmem [shape: bf16[8,16], index: 2, kind: input, shape index: {}]
  %s3 = inlined_call_operand.vmem [shape: bf16[64,32], index: 3, kind: input, shape index: {}]
  %s4 = inlined_call_operand.vmem [shape: bf16[128,8], index: 4, kind: input, shape index: {}]
  %s5 = inlined_call_operand.vmem [shape: f32[128,1], index: 5, kind: input, shape index: {}]
  %s6 = inlined_call_operand.vmem [shape: f32[128,8], index: 6, kind: input, shape index: {}]
  %s7 = inlined_call_operand.vmem [shape: f32[128,1], index: 7, kind: input, shape index: {}]
  %s8 = inlined_call_operand.vmem [shape: bf16[4,128], index: 8, kind: input, shape index: {}]
  %s9 = inlined_call_operand.vmem [shape: f32[4,1], index: 9, kind: input, shape index: {}]
  %s10 = inlined_call_operand.vmem [shape: bf16[4,8], index: 10, kind: input, shape index: {}]
  %s11 = inlined_call_operand.vmem [shape: f32[4,1], index: 11, kind: input, shape index: {}]
  %s12 = inlined_call_operand.hbm [shape: f32[2,8,256], index: 12, kind: output, shape index: {}]
  %s13 = sld [smem:[#allocation0]]
  $region81: #{tpu_custom_call.1} parent=0
    _
  %s15 = ssub.s32 1, %s13
  %s16 = scalar_select 0, %s15, %s13
  $region1: #{tpu_custom_call.1} parent=0
    #allocation2 [shape = 'u8[16384]{0}', space=vmem, size = 0x4000, scoped, tag = 'output window, operand 0']
    #allocation3 [shape = 's32[2]{0}', space=sflag, size = 0x8, scoped, tag = 'scoped memory for tpu_custom_call.1']
    %17 = vsyncpa [#allocation3], 0
    %s18 = scalar_lea.sflag [#allocation3], 1
    %19 = vsyncpa %s18, 0
    loop: start=0, step=1, limit=4
    $region2: #{tpu_custom_call.1} parent=1 // loop_pre_header
      _
    $region3: #{tpu_custom_call.1} parent=1 // loop_header
      %s21 = sphi 0, %s25
      %p22 = scmp.ge.s32.totalorder %s21, 4
      %s31 = sphi 0, %s33
      %s34 = sphi 0, %s31
      %s35 = sphi 0, %s34
      %s51 = sphi 0, %s35
      %s57 = sphi 0, %s59
      %s60 = sphi 0, %s57
      %s61 = sphi 0, %s60
      %s77 = sphi 0, %s61
      %s81 = sphi 0, %s81
      %s83 = sphi 0, %s81
      %s84 = sphi 0, %s83
      %s98 = sphi 0, %s84
      %s102 = sphi 0, %s102
      %s104 = sphi 0, %s102
      %s105 = sphi 0, %s104
      %s119 = sphi 0, %s105
      %s123 = sphi 0, %s123
      %s125 = sphi 0, %s123
      %s126 = sphi 0, %s125
      %s140 = sphi 0, %s126
      %s144 = sphi 0, %s144
      %s146 = sphi 0, %s144
      %s147 = sphi 0, %s146
      %s161 = sphi 0, %s147
      %s165 = sphi 0, %s165
      %s167 = sphi 0, %s165
      %s168 = sphi 0, %s167
      %s182 = sphi 0, %s168
      %s186 = sphi 0, %s186
      %s188 = sphi 0, %s186
      %s189 = sphi 0, %s188
      %s203 = sphi 0, %s189
      %s207 = sphi 0, %s207
      %s209 = sphi 0, %s207
      %s210 = sphi 0, %s209
      %s224 = sphi 0, %s210
      %s228 = sphi 0, %s228
      %s230 = sphi 0, %s228
      %s231 = sphi 0, %s230
      %s245 = sphi 0, %s231
      %s249 = sphi 0, %s249
      %s251 = sphi 0, %s249
      %s252 = sphi 0, %s251
      %s266 = sphi 0, %s252
      %s270 = sphi 0, %s270
      %s272 = sphi 0, %s270
      %s273 = sphi 0, %s272
      %s287 = sphi 0, %s273
      %s293 = sphi 0, %s295
      %s296 = sphi 0, %s293
      %s297 = sphi 0, %s296
      %s313 = sphi 0, %s297
    $region4: #{tpu_custom_call.1} parent=1 // loop_header_branch
      %24 = sbr.rel (%p22) target = $region8
    $region5: #{tpu_custom_call.1} parent=1 // loop_body
      %s26 = ssub.s32 %s21, 1
      %s27 = ssub.s32 %s21, 2
      %s28 = sadd.s32 %s21, 1
      %s29 = ssub.s32 %s21, %s28
      %p30 = scmp.eq.s32.totalorder %s29, 0
      %s32 = sadd.s32 %s31, 1
      %s33 = scalar_select %p30, %s31, %s32
      %p36 = pneg %p30
      %p37 = scmp.eq.s32.totalorder %s21, 1
      %p38 = por %p36, %p37
      %p39 = scmp.ne.s32.totalorder %s31, %s34
      %p40 = scmp.eq.s32.totalorder %s21, 0
      %p41 = por %p39, %p40
      %p42 = scmp.ne.s32.totalorder %s31, %s34
      %p43 = scmp.eq.s32.totalorder %s26, 1
      %p44 = por %p42, %p43
      %p45 = scmp.ne.s32.totalorder %s34, %s35
      %p46 = scmp.eq.s32.totalorder %s26, 0
      %p47 = por %p45, %p46
      %p48 = scmp.ne.s32.totalorder %s34, %s35
      %p49 = scmp.eq.s32.totalorder %s27, 1
      %p50 = por %p48, %p49
      %p52 = scmp.ne.s32.totalorder %s35, %s51
      %p53 = scmp.eq.s32.totalorder %s27, 0
      %p54 = por %p52, %p53
      %s55 = ssub.s32 %s21, %s28
      %p56 = scmp.eq.s32.totalorder %s55, 0
      %s58 = sadd.s32 %s57, 1
      %s59 = scalar_select %p56, %s57, %s58
      %p62 = pneg %p56
      %p63 = scmp.eq.s32.totalorder %s21, 1
      %p64 = por %p62, %p63
      %p65 = scmp.ne.s32.totalorder %s57, %s60
      %p66 = scmp.eq.s32.totalorder %s21, 0
      %p67 = por %p65, %p66
      %p68 = scmp.ne.s32.totalorder %s57, %s60
      %p69 = scmp.eq.s32.totalorder %s26, 1
      %p70 = por %p68, %p69
      %p71 = scmp.ne.s32.totalorder %s60, %s61
      %p72 = scmp.eq.s32.totalorder %s26, 0
      %p73 = por %p71, %p72
      %p74 = scmp.ne.s32.totalorder %s60, %s61
      %p75 = scmp.eq.s32.totalorder %s27, 1
      %p76 = por %p74, %p75
      %p78 = scmp.ne.s32.totalorder %s61, %s77
      %p79 = scmp.eq.s32.totalorder %s27, 0
      %p80 = por %p78, %p79
      %s82 = sadd.s32 %s81, 1
      %p85 = scmp.eq.s32.totalorder %s21, 1
      %p86 = scmp.ne.s32.totalorder %s81, %s83
      %p87 = scmp.eq.s32.totalorder %s21, 0
      %p88 = por %p86, %p87
      %p89 = scmp.ne.s32.totalorder %s81, %s83
      %p90 = scmp.eq.s32.totalorder %s26, 1
      %p91 = por %p89, %p90
      %p92 = scmp.ne.s32.totalorder %s83, %s84
      %p93 = scmp.eq.s32.totalorder %s26, 0
      %p94 = por %p92, %p93
      %p95 = scmp.ne.s32.totalorder %s83, %s84
      %p96 = scmp.eq.s32.totalorder %s27, 1
      %p97 = por %p95, %p96
      %p99 = scmp.ne.s32.totalorder %s84, %s98
      %p100 = scmp.eq.s32.totalorder %s27, 0
      %p101 = por %p99, %p100
      %s103 = sadd.s32 %s102, 1
      %p106 = scmp.eq.s32.totalorder %s21, 1
      %p107 = scmp.ne.s32.totalorder %s102, %s104
      %p108 = scmp.eq.s32.totalorder %s21, 0
      %p109 = por %p107, %p108
      %p110 = scmp.ne.s32.totalorder %s102, %s104
      %p111 = scmp.eq.s32.totalorder %s26, 1
      %p112 = por %p110, %p111
      %p113 = scmp.ne.s32.totalorder %s104, %s105
      %p114 = scmp.eq.s32.totalorder %s26, 0
      %p115 = por %p113, %p114
      %p116 = scmp.ne.s32.totalorder %s104, %s105
      %p117 = scmp.eq.s32.totalorder %s27, 1
      %p118 = por %p116, %p117
      %p120 = scmp.ne.s32.totalorder %s105, %s119
      %p121 = scmp.eq.s32.totalorder %s27, 0
      %p122 = por %p120, %p121
      %s124 = sadd.s32 %s123, 1
      %p127 = scmp.eq.s32.totalorder %s21, 1
      %p128 = scmp.ne.s32.totalorder %s123, %s125
      %p129 = scmp.eq.s32.totalorder %s21, 0
      %p130 = por %p128, %p129
      %p131 = scmp.ne.s32.totalorder %s123, %s125
      %p132 = scmp.eq.s32.totalorder %s26, 1
      %p133 = por %p131, %p132
      %p134 = scmp.ne.s32.totalorder %s125, %s126
      %p135 = scmp.eq.s32.totalorder %s26, 0
      %p136 = por %p134, %p135
      %p137 = scmp.ne.s32.totalorder %s125, %s126
      %p138 = scmp.eq.s32.totalorder %s27, 1
      %p139 = por %p137, %p138
      %p141 = scmp.ne.s32.totalorder %s126, %s140
      %p142 = scmp.eq.s32.totalorder %s27, 0
      %p143 = por %p141, %p142
      %s145 = sadd.s32 %s144, 1
      %p148 = scmp.eq.s32.totalorder %s21, 1
      %p149 = scmp.ne.s32.totalorder %s144, %s146
      %p150 = scmp.eq.s32.totalorder %s21, 0
      %p151 = por %p149, %p150
      %p152 = scmp.ne.s32.totalorder %s144, %s146
      %p153 = scmp.eq.s32.totalorder %s26, 1
      %p154 = por %p152, %p153
      %p155 = scmp.ne.s32.totalorder %s146, %s147
      %p156 = scmp.eq.s32.totalorder %s26, 0
      %p157 = por %p155, %p156
      %p158 = scmp.ne.s32.totalorder %s146, %s147
      %p159 = scmp.eq.s32.totalorder %s27, 1
      %p160 = por %p158, %p159
      %p162 = scmp.ne.s32.totalorder %s147, %s161
      %p163 = scmp.eq.s32.totalorder %s27, 0
      %p164 = por %p162, %p163
      %s166 = sadd.s32 %s165, 1
      %p169 = scmp.eq.s32.totalorder %s21, 1
      %p170 = scmp.ne.s32.totalorder %s165, %s167
      %p171 = scmp.eq.s32.totalorder %s21, 0
      %p172 = por %p170, %p171
      %p173 = scmp.ne.s32.totalorder %s165, %s167
      %p174 = scmp.eq.s32.totalorder %s26, 1
      %p175 = por %p173, %p174
      %p176 = scmp.ne.s32.totalorder %s167, %s168
      %p177 = scmp.eq.s32.totalorder %s26, 0
      %p178 = por %p176, %p177
      %p179 = scmp.ne.s32.totalorder %s167, %s168
      %p180 = scmp.eq.s32.totalorder %s27, 1
      %p181 = por %p179, %p180
      %p183 = scmp.ne.s32.totalorder %s168, %s182
      %p184 = scmp.eq.s32.totalorder %s27, 0
      %p185 = por %p183, %p184
      %s187 = sadd.s32 %s186, 1
      %p190 = scmp.eq.s32.totalorder %s21, 1
      %p191 = scmp.ne.s32.totalorder %s186, %s188
      %p192 = scmp.eq.s32.totalorder %s21, 0
      %p193 = por %p191, %p192
      %p194 = scmp.ne.s32.totalorder %s186, %s188
      %p195 = scmp.eq.s32.totalorder %s26, 1
      %p196 = por %p194, %p195
      %p197 = scmp.ne.s32.totalorder %s188, %s189
      %p198 = scmp.eq.s32.totalorder %s26, 0
      %p199 = por %p197, %p198
      %p200 = scmp.ne.s32.totalorder %s188, %s189
      %p201 = scmp.eq.s32.totalorder %s27, 1
      %p202 = por %p200, %p201
      %p204 = scmp.ne.s32.totalorder %s189, %s203
      %p205 = scmp.eq.s32.totalorder %s27, 0
      %p206 = por %p204, %p205
      %s208 = sadd.s32 %s207, 1
      %p211 = scmp.eq.s32.totalorder %s21, 1
      %p212 = scmp.ne.s32.totalorder %s207, %s209
      %p213 = scmp.eq.s32.totalorder %s21, 0
      %p214 = por %p212, %p213
      %p215 = scmp.ne.s32.totalorder %s207, %s209
      %p216 = scmp.eq.s32.totalorder %s26, 1
      %p217 = por %p215, %p216
      %p218 = scmp.ne.s32.totalorder %s209, %s210
      %p219 = scmp.eq.s32.totalorder %s26, 0
      %p220 = por %p218, %p219
      %p221 = scmp.ne.s32.totalorder %s209, %s210
      %p222 = scmp.eq.s32.totalorder %s27, 1
      %p223 = por %p221, %p222
      %p225 = scmp.ne.s32.totalorder %s210, %s224
      %p226 = scmp.eq.s32.totalorder %s27, 0
      %p227 = por %p225, %p226
      %s229 = sadd.s32 %s228, 1
      %p232 = scmp.eq.s32.totalorder %s21, 1
      %p233 = scmp.ne.s32.totalorder %s228, %s230
      %p234 = scmp.eq.s32.totalorder %s21, 0
      %p235 = por %p233, %p234
      %p236 = scmp.ne.s32.totalorder %s228, %s230
      %p237 = scmp.eq.s32.totalorder %s26, 1
      %p238 = por %p236, %p237
      %p239 = scmp.ne.s32.totalorder %s230, %s231
      %p240 = scmp.eq.s32.totalorder %s26, 0
      %p241 = por %p239, %p240
      %p242 = scmp.ne.s32.totalorder %s230, %s231
      %p243 = scmp.eq.s32.totalorder %s27, 1
      %p244 = por %p242, %p243
      %p246 = scmp.ne.s32.totalorder %s231, %s245
      %p247 = scmp.eq.s32.totalorder %s27, 0
      %p248 = por %p246, %p247
      %s250 = sadd.s32 %s249, 1
      %p253 = scmp.eq.s32.totalorder %s21, 1
      %p254 = scmp.ne.s32.totalorder %s249, %s251
      %p255 = scmp.eq.s32.totalorder %s21, 0
      %p256 = por %p254, %p255
      %p257 = scmp.ne.s32.totalorder %s249, %s251
      %p258 = scmp.eq.s32.totalorder %s26, 1
      %p259 = por %p257, %p258
      %p260 = scmp.ne.s32.totalorder %s251, %s252
      %p261 = scmp.eq.s32.totalorder %s26, 0
      %p262 = por %p260, %p261
      %p263 = scmp.ne.s32.totalorder %s251, %s252
      %p264 = scmp.eq.s32.totalorder %s27, 1
      %p265 = por %p263, %p264
      %p267 = scmp.ne.s32.totalorder %s252, %s266
      %p268 = scmp.eq.s32.totalorder %s27, 0
      %p269 = por %p267, %p268
      %s271 = sadd.s32 %s270, 1
      %p274 = scmp.eq.s32.totalorder %s21, 1
      %p275 = scmp.ne.s32.totalorder %s270, %s272
      %p276 = scmp.eq.s32.totalorder %s21, 0
      %p277 = por %p275, %p276
      %p278 = scmp.ne.s32.totalorder %s270, %s272
      %p279 = scmp.eq.s32.totalorder %s26, 1
      %p280 = por %p278, %p279
      %p281 = scmp.ne.s32.totalorder %s272, %s273
      %p282 = scmp.eq.s32.totalorder %s26, 0
      %p283 = por %p281, %p282
      %p284 = scmp.ne.s32.totalorder %s272, %s273
      %p285 = scmp.eq.s32.totalorder %s27, 1
      %p286 = por %p284, %p285
      %p288 = scmp.ne.s32.totalorder %s273, %s287
      %p289 = scmp.eq.s32.totalorder %s27, 0
      %p290 = por %p288, %p289
      %s291 = ssub.s32 %s21, %s28
      %p292 = scmp.eq.s32.totalorder %s291, 0
      %s294 = sadd.s32 %s293, 1
      %s295 = scalar_select %p292, %s293, %s294
      %p298 = pneg %p292
      %p299 = scmp.eq.s32.totalorder %s21, 1
      %p300 = por %p298, %p299
      %p301 = scmp.ne.s32.totalorder %s293, %s296
      %p302 = scmp.eq.s32.totalorder %s21, 0
      %p303 = por %p301, %p302
      %p304 = scmp.ne.s32.totalorder %s293, %s296
      %p305 = scmp.eq.s32.totalorder %s26, 1
      %p306 = por %p304, %p305
      %p307 = scmp.ne.s32.totalorder %s296, %s297
      %p308 = scmp.eq.s32.totalorder %s26, 0
      %p309 = por %p307, %p308
      %p310 = scmp.ne.s32.totalorder %s296, %s297
      %p311 = scmp.eq.s32.totalorder %s27, 1
      %p312 = por %p310, %p311
      %p314 = scmp.ne.s32.totalorder %s297, %s313
      %p315 = scmp.eq.s32.totalorder %s27, 0
      %p316 = por %p314, %p315
      %p317 = scmp.le.s32.totalorder 1, %s21
      %p318 = scmp.lt.s32.totalorder %s21, 3
      %p319 = pnand %p317, %p318
      %p320 = pneg %p319
      // Predicated region
      $region9: #{tpu_custom_call.1} parent=5 // pred_check
        _
      $region10: #{tpu_custom_call.1} parent=5 // pred_check_branch
        %322 = sbr.rel (%p319) target = $region12
      $region11: #{tpu_custom_call.1} parent=5 // pred_region
        %s323 = ssub.s32 %s21, 1
        // Predicated region
        $region13: #{tpu_custom_call.1} parent=11 // pred_check
          %p324 = pneg %p94
        $region14: #{tpu_custom_call.1} parent=11 // pred_check_branch
          %326 = sbr.rel (%p324) target = $region16
        $region15: #{tpu_custom_call.1} parent=11 // pred_region
          _
        $region16: #{tpu_custom_call.1} parent=11 // pred_fallthru
          _
        // Predicated region
        $region17: #{tpu_custom_call.1} parent=11 // pred_check
          %p327 = pneg %p115
        $region18: #{tpu_custom_call.1} parent=11 // pred_check_branch
          %329 = sbr.rel (%p327) target = $region20
        $region19: #{tpu_custom_call.1} parent=11 // pred_region
          _
        $region20: #{tpu_custom_call.1} parent=11 // pred_fallthru
          _
        // Predicated region
        $region21: #{tpu_custom_call.1} parent=11 // pred_check
          %p330 = pneg %p136
        $region22: #{tpu_custom_call.1} parent=11 // pred_check_branch
          %332 = sbr.rel (%p330) target = $region24
        $region23: #{tpu_custom_call.1} parent=11 // pred_region
          _
        $region24: #{tpu_custom_call.1} parent=11 // pred_fallthru
          _
        // Predicated region
        $region25: #{tpu_custom_call.1} parent=11 // pred_check
          %p333 = pneg %p157
        $region26: #{tpu_custom_call.1} parent=11 // pred_check_branch
          %335 = sbr.rel (%p333) target = $region28
        $region27: #{tpu_custom_call.1} parent=11 // pred_region
          _
        $region28: #{tpu_custom_call.1} parent=11 // pred_fallthru
          _
        // Predicated region
        $region29: #{tpu_custom_call.1} parent=11 // pred_check
          %p336 = pneg %p178
        $region30: #{tpu_custom_call.1} parent=11 // pred_check_branch
          %338 = sbr.rel (%p336) target = $region32
        $region31: #{tpu_custom_call.1} parent=11 // pred_region
          _
        $region32: #{tpu_custom_call.1} parent=11 // pred_fallthru
          _
        // Predicated region
        $region33: #{tpu_custom_call.1} parent=11 // pred_check
          %p339 = pneg %p199
        $region34: #{tpu_custom_call.1} parent=11 // pred_check_branch
          %341 = sbr.rel (%p339) target = $region36
        $region35: #{tpu_custom_call.1} parent=11 // pred_region
          _
        $region36: #{tpu_custom_call.1} parent=11 // pred_fallthru
          _
        // Predicated region
        $region37: #{tpu_custom_call.1} parent=11 // pred_check
          %p342 = pneg %p220
        $region38: #{tpu_custom_call.1} parent=11 // pred_check_branch
          %344 = sbr.rel (%p342) target = $region40
        $region39: #{tpu_custom_call.1} parent=11 // pred_region
          _
        $region40: #{tpu_custom_call.1} parent=11 // pred_fallthru
          _
        // Predicated region
        $region41: #{tpu_custom_call.1} parent=11 // pred_check
          %p345 = pneg %p241
        $region42: #{tpu_custom_call.1} parent=11 // pred_check_branch
          %347 = sbr.rel (%p345) target = $region44
        $region43: #{tpu_custom_call.1} parent=11 // pred_region
          _
        $region44: #{tpu_custom_call.1} parent=11 // pred_fallthru
          _
        // Predicated region
        $region45: #{tpu_custom_call.1} parent=11 // pred_check
          %p348 = pneg %p262
        $region46: #{tpu_custom_call.1} parent=11 // pred_check_branch
          %350 = sbr.rel (%p348) target = $region48
        $region47: #{tpu_custom_call.1} parent=11 // pred_region
          _
        $region48: #{tpu_custom_call.1} parent=11 // pred_fallthru
          _
        // Predicated region
        $region49: #{tpu_custom_call.1} parent=11 // pred_check
          %p351 = pneg %p283
        $region50: #{tpu_custom_call.1} parent=11 // pred_check_branch
          %353 = sbr.rel (%p351) target = $region52
        $region51: #{tpu_custom_call.1} parent=11 // pred_region
          _
        $region52: #{tpu_custom_call.1} parent=11 // pred_fallthru
          _
      $region12: #{tpu_custom_call.1} parent=5 // pred_fallthru
        _
      %p354 = scmp.lt.s32.totalorder %s21, 2
      // Predicated region
      $region53: #{tpu_custom_call.1} parent=5 // pred_check
        %p355 = pneg %p354
      $region54: #{tpu_custom_call.1} parent=5 // pred_check_branch
        %357 = sbr.rel (%p355) target = $region56
      $region55: #{tpu_custom_call.1} parent=5 // pred_region
        // Predicated region
        $region57: #{tpu_custom_call.1} parent=55 // pred_check
          %p358 = pneg %p41
        $region58: #{tpu_custom_call.1} parent=55 // pred_check_branch
          %360 = sbr.rel (%p358) target = $region60
        $region59: #{tpu_custom_call.1} parent=55 // pred_region
          %p361 = scmp.lt.s32.totalorder %s21, 1
          %s362 = scalar_select %p361, %s21, 1
          %s363 = smul.addr %s362, 8
          %s364 = scalar_lea.vmem %s0, %s363
        $region60: #{tpu_custom_call.1} parent=55 // pred_fallthru
          _
        // Predicated region
        $region61: #{tpu_custom_call.1} parent=55 // pred_check
          %p365 = pneg %p67
        $region62: #{tpu_custom_call.1} parent=55 // pred_check_branch
          %367 = sbr.rel (%p365) target = $region64
        $region63: #{tpu_custom_call.1} parent=55 // pred_region
          %p368 = scmp.lt.s32.totalorder %s21, 1
          %s369 = scalar_select %p368, %s21, 1
          %s370 = smul.addr %s369, 2
          %s371 = smul.addr %s370, 8
          %s372 = scalar_lea.vmem %s1, %s371
        $region64: #{tpu_custom_call.1} parent=55 // pred_fallthru
          _
      $region56: #{tpu_custom_call.1} parent=5 // pred_fallthru
        _
      %p373 = scmp.le.s32.totalorder 1, %s21
      %p374 = scmp.lt.s32.totalorder %s21, 3
      %p375 = pnand %p373, %p374
      %p376 = pneg %p375
      // Predicated region
      $region65: #{tpu_custom_call.1} parent=5 // pred_check
        _
      $region66: #{tpu_custom_call.1} parent=5 // pred_check_branch
        %378 = sbr.rel (%p375) target = $region68
      $region67: #{tpu_custom_call.1} parent=5 // pred_region
        %s379 = ssub.s32 %s21, 1
        %p380 = scmp.lt.s32.totalorder %s26, 1
        %s381 = scalar_select %p380, %s26, 1
        %s382 = smul.addr %s381, 8
        %s383 = scalar_lea.vmem %s0, %s382
        %p384 = pneg %p47
        %p385 = pneg %p44
        %p386 = scmp.lt.s32.totalorder %s26, 1
        %s387 = scalar_select %p386, %s26, 1
        %s388 = smul.addr %s387, 2
        %s389 = smul.addr %s388, 8
        %s390 = scalar_lea.vmem %s1, %s389
        %p391 = pneg %p73
        %p392 = pneg %p70
        %p393 = pneg %p94
        %p394 = pneg %p91
        %p395 = pneg %p115
        %p396 = pneg %p112
        %p397 = pneg %p136
        %p398 = pneg %p133
        %p399 = pneg %p157
        %p400 = pneg %p154
        %p401 = pneg %p178
        %p402 = pneg %p175
        %p403 = pneg %p199
        %p404 = pneg %p196
        %p405 = pneg %p220
        %p406 = pneg %p217
        %p407 = pneg %p241
        %p408 = pneg %p238
        %p409 = pneg %p262
        %p410 = pneg %p259
        %p411 = pneg %p283
        %p412 = pneg %p280
        %p413 = pneg %p309
        %p414 = pneg %p306
        %s415 = sand.u32 %s296, 1
        %s416 = scalar_lea.sflag [#allocation3], %s415
        %s417 = sand.u32 %s296, 1
        %s418 = smul.addr %s417, 16
        %s419 = scalar_lea.vmem [#allocation2], %s418
        %p420 = scmp.lt.s32.totalorder %s26, 1
        %s421 = scalar_select %p420, %s26, 1
        %s422 = smul.addr %s421, 8
        %s423 = scalar_lea.vmem %s0, %s422
        %p424 = scmp.lt.s32.totalorder %s26, 1
        %s425 = scalar_select %p424, %s26, 1
        %s426 = smul.addr %s425, 2
        %s427 = smul.addr %s426, 8
        %s428 = scalar_lea.vmem %s1, %s427
        %v430 = vld [vmem:[%s423] sm:$0xff]
        %v431 = vpack.c.bf16 %v430, %v430
        %v432 = vld [vmem:[%s428] sm:$0xff]
        %v433 = vld [vmem:[%s428 + $0x8] sm:$0xff]
        %v434 = vpack.c.bf16 %v432, %v432
        %v435 = vpack.c.bf16 %v433, %v433
        %v436 = vld [vmem:[%s4] sm:$0xf]
        %v437 = vld [vmem:[%s4 + $0x4] sm:$0xf]
        %v438 = vld [vmem:[%s4 + $0x8] sm:$0xf]
        %v439 = vld [vmem:[%s4 + $0xc] sm:$0xf]
        %v440 = vld [vmem:[%s4 + $0x10] sm:$0xf]
        %v441 = vld [vmem:[%s4 + $0x14] sm:$0xf]
        %v442 = vld [vmem:[%s4 + $0x18] sm:$0xf]
        %v443 = vld [vmem:[%s4 + $0x1c] sm:$0xf]
        %v444 = vld [vmem:[%s4 + $0x20] sm:$0xf]
        %v445 = vld [vmem:[%s4 + $0x24] sm:$0xf]
        %v446 = vld [vmem:[%s4 + $0x28] sm:$0xf]
        %v447 = vld [vmem:[%s4 + $0x2c] sm:$0xf]
        %v448 = vld [vmem:[%s4 + $0x30] sm:$0xf]
        %v449 = vld [vmem:[%s4 + $0x34] sm:$0xf]
        %v450 = vld [vmem:[%s4 + $0x38] sm:$0xf]
        %v451 = vld [vmem:[%s4 + $0x3c] sm:$0xf]
        %v452 = vld [vmem:[%s5] sm:$0xff]
        %v453 = vld [vmem:[%s5 + $0x8] sm:$0xff]
        %v454 = vld [vmem:[%s5 + $0x10] sm:$0xff]
        %v455 = vld [vmem:[%s5 + $0x18] sm:$0xff]
        %v456 = vld [vmem:[%s5 + $0x20] sm:$0xff]
        %v457 = vld [vmem:[%s5 + $0x28] sm:$0xff]
        %v458 = vld [vmem:[%s5 + $0x30] sm:$0xff]
        %v459 = vld [vmem:[%s5 + $0x38] sm:$0xff]
        %v460 = vld [vmem:[%s5 + $0x40] sm:$0xff]
        %v461 = vld [vmem:[%s5 + $0x48] sm:$0xff]
        %v462 = vld [vmem:[%s5 + $0x50] sm:$0xff]
        %v463 = vld [vmem:[%s5 + $0x58] sm:$0xff]
        %v464 = vld [vmem:[%s5 + $0x60] sm:$0xff]
        %v465 = vld [vmem:[%s5 + $0x68] sm:$0xff]
        %v466 = vld [vmem:[%s5 + $0x70] sm:$0xff]
        %v467 = vld [vmem:[%s5 + $0x78] sm:$0xff]
        %469 = vset.pattern.permute.xlu0 0
        %470 = vperm.xlu0 %469, %v452
        %v471 = vpop.permute.xlu0 %470
        %474 = vset.pattern.permute.xlu0 0
        %475 = vperm.xlu0 %474, %v453
        %v476 = vpop.permute.xlu0 %475
        %479 = vset.pattern.permute.xlu0 0
        %480 = vperm.xlu0 %479, %v454
        %v481 = vpop.permute.xlu0 %480
        %484 = vset.pattern.permute.xlu0 0
        %485 = vperm.xlu0 %484, %v455
        %v486 = vpop.permute.xlu0 %485
        %489 = vset.pattern.permute.xlu0 0
        %490 = vperm.xlu0 %489, %v456
        %v491 = vpop.permute.xlu0 %490
        %494 = vset.pattern.permute.xlu0 0
        %495 = vperm.xlu0 %494, %v457
        %v496 = vpop.permute.xlu0 %495
        %499 = vset.pattern.permute.xlu0 0
        %500 = vperm.xlu0 %499, %v458
        %v501 = vpop.permute.xlu0 %500
        %504 = vset.pattern.permute.xlu0 0
        %505 = vperm.xlu0 %504, %v459
        %v506 = vpop.permute.xlu0 %505
        %509 = vset.pattern.permute.xlu0 0
        %510 = vperm.xlu0 %509, %v460
        %v511 = vpop.permute.xlu0 %510
        %514 = vset.pattern.permute.xlu0 0
        %515 = vperm.xlu0 %514, %v461
        %v516 = vpop.permute.xlu0 %515
        %519 = vset.pattern.permute.xlu0 0
        %520 = vperm.xlu0 %519, %v462
        %v521 = vpop.permute.xlu0 %520
        %524 = vset.pattern.permute.xlu0 0
        %525 = vperm.xlu0 %524, %v463
        %v526 = vpop.permute.xlu0 %525
        %529 = vset.pattern.permute.xlu0 0
        %530 = vperm.xlu0 %529, %v464
        %v531 = vpop.permute.xlu0 %530
        %534 = vset.pattern.permute.xlu0 0
        %535 = vperm.xlu0 %534, %v465
        %v536 = vpop.permute.xlu0 %535
        %539 = vset.pattern.permute.xlu0 0
        %540 = vperm.xlu0 %539, %v466
        %v541 = vpop.permute.xlu0 %540
        %544 = vset.pattern.permute.xlu0 0
        %545 = vperm.xlu0 %544, %v467
        %v546 = vpop.permute.xlu0 %545
        %v564 = vunpack.c.l.b16 %v436
        %v565 = vunpack.c.l.b16 %v437
        %v566 = vunpack.c.l.b16 %v438
        %v567 = vunpack.c.l.b16 %v439
        %v568 = vunpack.c.l.b16 %v440
        %v569 = vunpack.c.l.b16 %v441
        %v570 = vunpack.c.l.b16 %v442
        %v571 = vunpack.c.l.b16 %v443
        %v572 = vunpack.c.l.b16 %v444
        %v573 = vunpack.c.l.b16 %v445
        %v574 = vunpack.c.l.b16 %v446
        %v575 = vunpack.c.l.b16 %v447
        %v576 = vunpack.c.l.b16 %v448
        %v577 = vunpack.c.l.b16 %v449
        %v578 = vunpack.c.l.b16 %v450
        %v579 = vunpack.c.l.b16 %v451
        %v580 = vpack.c.b16 %v565, %v564
        %v581 = vpack.c.b16 %v567, %v566
        %v582 = vpack.c.b16 %v569, %v568
        %v583 = vpack.c.b16 %v571, %v570
        %v584 = vpack.c.b16 %v573, %v572
        %v585 = vpack.c.b16 %v575, %v574
        %v586 = vpack.c.b16 %v577, %v576
        %v587 = vpack.c.b16 %v579, %v578
        %vm588 = vcmask 64512
        %v590 = vsel %vm588, %v580, 0
        %v593 = vsel %vm588, %v581, 0
        %v596 = vsel %vm588, %v582, 0
        %v599 = vsel %vm588, %v583, 0
        %v602 = vsel %vm588, %v584, 0
        %v605 = vsel %vm588, %v585, 0
        %v608 = vsel %vm588, %v586, 0
        %v611 = vsel %vm588, %v587, 0
        %vm613 = vcmask 1043456
        %v615 = vsel %vm613, %v431, 0
        %617 = vmatprep.subr.bf16.mxu0 0
        %618 = vmatpush1.bf16.msra.mxu0 0
        %619 = vmatprep.subr.bf16.mxu0 0
        %620 = vmatpush1.bf16.msra.mxu0 0
        %621 = vmatprep.subr.bf16.mxu0 0
        %622 = vmatpush1.bf16.msra.mxu0 0
        %623 = vmatprep.subr.bf16.mxu0 0
        %624 = vmatpush1.bf16.msra.mxu0 0
        %625 = vmatprep.subr.bf16.mxu0 0
        %626 = vmatpush1.bf16.msra.mxu0 0
        %627 = vmatprep.subr.bf16.mxu0 0
        %628 = vmatpush1.bf16.msra.mxu0 0
        %629 = vmatprep.subr.bf16.mxu0 0
        %630 = vmatpush1.bf16.msra.mxu0 0
        %631 = vmatprep.subr.bf16.mxu0 0
        %632 = vmatpush1.bf16.msra.mxu0 %v615
        %633 = vmatprep.subr.bf16.mxu0 0
        %634 = vmatpush2.bf16.msra.mxu0 0
        %635 = vmatprep.subr.bf16.mxu0 0
        %636 = vmatpush2.bf16.msra.mxu0 0
        %637 = vmatprep.subr.bf16.mxu0 0
        %638 = vmatpush2.bf16.msra.mxu0 0
        %639 = vmatprep.subr.bf16.mxu0 0
        %640 = vmatpush2.bf16.msra.mxu0 0
        %641 = vmatprep.subr.bf16.mxu0 0
        %642 = vmatpush2.bf16.msra.mxu0 0
        %643 = vmatprep.subr.bf16.mxu0 0
        %644 = vmatpush2.bf16.msra.mxu0 0
        %645 = vmatprep.subr.bf16.mxu0 0
        %646 = vmatpush2.bf16.msra.mxu0 0
        %647 = vmatprep.subr.bf16.mxu0 0
        %648 = vmatpush2.bf16.msra.mxu0 0
        %649 = vmatprep.mubr.bf16.mxu0 0
        %650 = vmatmul.mubr.bf16.gmra.mxu0 %v590
        %v651 = vpop.f32.mrf.mxu0
        %v652 = vadd.f32 %v471, %v651
        %v653 = vpop.f32.mrf.mxu0
        %v654 = vpop.f32.mrf.mxu0
        %v655 = vadd.f32 %v476, %v654
        %v656 = vpop.f32.mrf.mxu0
        %657 = vmatprep.mubr.bf16.mxu0 0
        %658 = vmatmul.mubr.bf16.gmra.mxu0 %v593
        %v659 = vpop.f32.mrf.mxu0
        %v660 = vadd.f32 %v481, %v659
        %v661 = vpop.f32.mrf.mxu0
        %v662 = vpop.f32.mrf.mxu0
        %v663 = vadd.f32 %v486, %v662
        %v664 = vpop.f32.mrf.mxu0
        %665 = vmatprep.mubr.bf16.mxu0 0
        %666 = vmatmul.mubr.bf16.gmra.mxu0 %v596
        %v667 = vpop.f32.mrf.mxu0
        %v668 = vadd.f32 %v491, %v667
        %v669 = vpop.f32.mrf.mxu0
        %v670 = vpop.f32.mrf.mxu0
        %v671 = vadd.f32 %v496, %v670
        %v672 = vpop.f32.mrf.mxu0
        %673 = vmatprep.mubr.bf16.mxu0 0
        %674 = vmatmul.mubr.bf16.gmra.mxu0 %v599
        %v675 = vpop.f32.mrf.mxu0
        %v676 = vadd.f32 %v501, %v675
        %v677 = vpop.f32.mrf.mxu0
        %v678 = vpop.f32.mrf.mxu0
        %v679 = vadd.f32 %v506, %v678
        %v680 = vpop.f32.mrf.mxu0
        %681 = vmatprep.mubr.bf16.mxu0 0
        %682 = vmatmul.mubr.bf16.gmra.mxu0 %v602
        %v683 = vpop.f32.mrf.mxu0
        %v684 = vadd.f32 %v511, %v683
        %v685 = vpop.f32.mrf.mxu0
        %v686 = vpop.f32.mrf.mxu0
        %v687 = vadd.f32 %v516, %v686
        %v688 = vpop.f32.mrf.mxu0
        %689 = vmatprep.mubr.bf16.mxu0 0
        %690 = vmatmul.mubr.bf16.gmra.mxu0 %v605
        %v691 = vpop.f32.mrf.mxu0
        %v692 = vadd.f32 %v521, %v691
        %v693 = vpop.f32.mrf.mxu0
        %v694 = vpop.f32.mrf.mxu0
        %v695 = vadd.f32 %v526, %v694
        %v696 = vpop.f32.mrf.mxu0
        %697 = vmatprep.mubr.bf16.mxu0 0
        %698 = vmatmul.mubr.bf16.gmra.mxu0 %v608
        %v699 = vpop.f32.mrf.mxu0
        %v700 = vadd.f32 %v531, %v699
        %v701 = vpop.f32.mrf.mxu0
        %v702 = vpop.f32.mrf.mxu0
        %v703 = vadd.f32 %v536, %v702
        %v704 = vpop.f32.mrf.mxu0
        %705 = vmatprep.mubr.bf16.mxu0 0
        %706 = vmatmul.mubr.bf16.gmra.mxu0 %v611
        %v707 = vpop.f32.mrf.mxu0
        %v708 = vadd.f32 %v541, %v707
        %v709 = vpop.f32.mrf.mxu0
        %v710 = vpop.f32.mrf.mxu0
        %v711 = vadd.f32 %v546, %v710
        %v712 = vpop.f32.mrf.mxu0
        %713 = vdwg.mxu0
        %v714 = vmax.f32 %v652, 0.0
        %v715 = vmax.f32 %v655, 0.0
        %v716 = vmax.f32 %v660, 0.0
        %v717 = vmax.f32 %v663, 0.0
        %v718 = vmax.f32 %v668, 0.0
        %v719 = vmax.f32 %v671, 0.0
        %v720 = vmax.f32 %v676, 0.0
        %v721 = vmax.f32 %v679, 0.0
        %v722 = vmax.f32 %v684, 0.0
        %v723 = vmax.f32 %v687, 0.0
        %v724 = vmax.f32 %v692, 0.0
        %v725 = vmax.f32 %v695, 0.0
        %v726 = vmax.f32 %v700, 0.0
        %v727 = vmax.f32 %v703, 0.0
        %v728 = vmax.f32 %v708, 0.0
        %v729 = vmax.f32 %v711, 0.0
        %v730 = vmin.f32 %v714, 6.0
        %v731 = vmin.f32 %v715, 6.0
        %v732 = vmin.f32 %v716, 6.0
        %v733 = vmin.f32 %v717, 6.0
        %v734 = vmin.f32 %v718, 6.0
        %v735 = vmin.f32 %v719, 6.0
        %v736 = vmin.f32 %v720, 6.0
        %v737 = vmin.f32 %v721, 6.0
        %v738 = vmin.f32 %v722, 6.0
        %v739 = vmin.f32 %v723, 6.0
        %v740 = vmin.f32 %v724, 6.0
        %v741 = vmin.f32 %v725, 6.0
        %v742 = vmin.f32 %v726, 6.0
        %v743 = vmin.f32 %v727, 6.0
        %v744 = vmin.f32 %v728, 6.0
        %v745 = vmin.f32 %v729, 6.0
        %vm746 = vcmask 523264
        %v747 = vsel %vm746, %v430, 0.0
        %748 = vadd.xlane.f32.xlu0 %v747
        %v749 = vpop.xlane.xlu0 %748
        %v750 = vrcp.pop 64.0
        %v751 = vmul.f32 %v749, %v750
        %v752 = vld [vmem:[%s6] sm:$0xff]
        %v753 = vld [vmem:[%s6 + $0x8] sm:$0xff]
        %v754 = vld [vmem:[%s6 + $0x10] sm:$0xff]
        %v755 = vld [vmem:[%s6 + $0x18] sm:$0xff]
        %v756 = vld [vmem:[%s6 + $0x20] sm:$0xff]
        %v757 = vld [vmem:[%s6 + $0x28] sm:$0xff]
        %v758 = vld [vmem:[%s6 + $0x30] sm:$0xff]
        %v759 = vld [vmem:[%s6 + $0x38] sm:$0xff]
        %v760 = vld [vmem:[%s6 + $0x40] sm:$0xff]
        %v761 = vld [vmem:[%s6 + $0x48] sm:$0xff]
        %v762 = vld [vmem:[%s6 + $0x50] sm:$0xff]
        %v763 = vld [vmem:[%s6 + $0x58] sm:$0xff]
        %v764 = vld [vmem:[%s6 + $0x60] sm:$0xff]
        %v765 = vld [vmem:[%s6 + $0x68] sm:$0xff]
        %v766 = vld [vmem:[%s6 + $0x70] sm:$0xff]
        %v767 = vld [vmem:[%s6 + $0x78] sm:$0xff]
        %v768 = vld [vmem:[%s7] sm:$0xff]
        %v769 = vld [vmem:[%s7 + $0x8] sm:$0xff]
        %v770 = vld [vmem:[%s7 + $0x10] sm:$0xff]
        %v771 = vld [vmem:[%s7 + $0x18] sm:$0xff]
        %v772 = vld [vmem:[%s7 + $0x20] sm:$0xff]
        %v773 = vld [vmem:[%s7 + $0x28] sm:$0xff]
        %v774 = vld [vmem:[%s7 + $0x30] sm:$0xff]
        %v775 = vld [vmem:[%s7 + $0x38] sm:$0xff]
        %v776 = vld [vmem:[%s7 + $0x40] sm:$0xff]
        %v777 = vld [vmem:[%s7 + $0x48] sm:$0xff]
        %v778 = vld [vmem:[%s7 + $0x50] sm:$0xff]
        %v779 = vld [vmem:[%s7 + $0x58] sm:$0xff]
        %v780 = vld [vmem:[%s7 + $0x60] sm:$0xff]
        %v781 = vld [vmem:[%s7 + $0x68] sm:$0xff]
        %v782 = vld [vmem:[%s7 + $0x70] sm:$0xff]
        %v783 = vld [vmem:[%s7 + $0x78] sm:$0xff]
        %v785 = vsel %vm588, %v752, 0
        %v788 = vsel %vm588, %v753, 0
        %v791 = vsel %vm588, %v754, 0
        %v794 = vsel %vm588, %v755, 0
        %v797 = vsel %vm588, %v756, 0
        %v800 = vsel %vm588, %v757, 0
        %v803 = vsel %vm588, %v758, 0
        %v806 = vsel %vm588, %v759, 0
        %v809 = vsel %vm588, %v760, 0
        %v812 = vsel %vm588, %v761, 0
        %v815 = vsel %vm588, %v762, 0
        %v818 = vsel %vm588, %v763, 0
        %v821 = vsel %vm588, %v764, 0
        %v824 = vsel %vm588, %v765, 0
        %v827 = vsel %vm588, %v766, 0
        %v830 = vsel %vm588, %v767, 0
        %832 = vmatprep.subr.mxu0 0.0
        %833 = vmatpush1.msra.mxu0 0.0
        %834 = vmatprep.subr.mxu0 0.0
        %835 = vmatpush1.msra.mxu0 0.0
        %836 = vmatprep.subr.mxu0 0.0
        %837 = vmatpush1.msra.mxu0 0.0
        %838 = vmatprep.subr.mxu0 0.0
        %839 = vmatpush1.msra.mxu0 0.0
        %840 = vmatprep.subr.mxu0 0.0
        %841 = vmatpush1.msra.mxu0 0.0
        %842 = vmatprep.subr.mxu0 0.0
        %843 = vmatpush1.msra.mxu0 0.0
        %844 = vmatprep.subr.mxu0 0.0
        %845 = vmatpush1.msra.mxu0 0.0
        %846 = vmatprep.subr.mxu0 0.0
        %847 = vmatpush1.msra.mxu0 0.0
        %848 = vmatprep.subr.mxu0 0.0
        %849 = vmatpush1.msra.mxu0 0.0
        %850 = vmatprep.subr.mxu0 0.0
        %851 = vmatpush1.msra.mxu0 0.0
        %852 = vmatprep.subr.mxu0 0.0
        %853 = vmatpush1.msra.mxu0 0.0
        %854 = vmatprep.subr.mxu0 0.0
        %855 = vmatpush1.msra.mxu0 0.0
        %856 = vmatprep.subr.mxu0 0.0
        %857 = vmatpush1.msra.mxu0 0.0
        %858 = vmatprep.subr.mxu0 0.0
        %859 = vmatpush1.msra.mxu0 0.0
        %860 = vmatprep.subr.mxu0 0.0
        %861 = vmatpush1.msra.mxu0 0.0
        %862 = vmatprep.subr.mxu0 0.0
        %863 = vmatpush1.msra.mxu0 %v751
        %864 = vmatprep.subr.mxu0 0.0
        %865 = vmatpush2.msra.mxu0 0.0
        %866 = vmatprep.subr.mxu0 0.0
        %867 = vmatpush2.msra.mxu0 0.0
        %868 = vmatprep.subr.mxu0 0.0
        %869 = vmatpush2.msra.mxu0 0.0
        %870 = vmatprep.subr.mxu0 0.0
        %871 = vmatpush2.msra.mxu0 0.0
        %872 = vmatprep.subr.mxu0 0.0
        %873 = vmatpush2.msra.mxu0 0.0
        %874 = vmatprep.subr.mxu0 0.0
        %875 = vmatpush2.msra.mxu0 0.0
        %876 = vmatprep.subr.mxu0 0.0
        %877 = vmatpush2.msra.mxu0 0.0
        %878 = vmatprep.subr.mxu0 0.0
        %879 = vmatpush2.msra.mxu0 0.0
        %880 = vmatprep.subr.mxu0 0.0
        %881 = vmatpush2.msra.mxu0 0.0
        %882 = vmatprep.subr.mxu0 0.0
        %883 = vmatpush2.msra.mxu0 0.0
        %884 = vmatprep.subr.mxu0 0.0
        %885 = vmatpush2.msra.mxu0 0.0
        %886 = vmatprep.subr.mxu0 0.0
        %887 = vmatpush2.msra.mxu0 0.0
        %888 = vmatprep.subr.mxu0 0.0
        %889 = vmatpush2.msra.mxu0 0.0
        %890 = vmatprep.subr.mxu0 0.0
        %891 = vmatpush2.msra.mxu0 0.0
        %892 = vmatprep.subr.mxu0 0.0
        %893 = vmatpush2.msra.mxu0 0.0
        %894 = vmatprep.subr.mxu0 0.0
        %895 = vmatpush2.msra.mxu0 0.0
        %896 = vmatprep.mubr.f32.mxu0 0.0
        %897 = vmatmul.mubr.f32.gmra.mxu0 %v785
        %v898 = vpop.f32.mrf.mxu0
        %v899 = vadd.f32 %v768, %v898
        %v900 = vpop.f32.mrf.mxu0
        %901 = vmatprep.mubr.f32.mxu0 0.0
        %902 = vmatmul.mubr.f32.gmra.mxu0 %v788
        %v903 = vpop.f32.mrf.mxu0
        %v904 = vadd.f32 %v769, %v903
        %v905 = vpop.f32.mrf.mxu0
        %906 = vmatprep.mubr.f32.mxu0 0.0
        %907 = vmatmul.mubr.f32.gmra.mxu0 %v791
        %v908 = vpop.f32.mrf.mxu0
        %v909 = vadd.f32 %v770, %v908
        %v910 = vpop.f32.mrf.mxu0
        %911 = vmatprep.mubr.f32.mxu0 0.0
        %912 = vmatmul.mubr.f32.gmra.mxu0 %v794
        %v913 = vpop.f32.mrf.mxu0
        %v914 = vadd.f32 %v771, %v913
        %v915 = vpop.f32.mrf.mxu0
        %916 = vmatprep.mubr.f32.mxu0 0.0
        %917 = vmatmul.mubr.f32.gmra.mxu0 %v797
        %v918 = vpop.f32.mrf.mxu0
        %v919 = vadd.f32 %v772, %v918
        %v920 = vpop.f32.mrf.mxu0
        %921 = vmatprep.mubr.f32.mxu0 0.0
        %922 = vmatmul.mubr.f32.gmra.mxu0 %v800
        %v923 = vpop.f32.mrf.mxu0
        %v924 = vadd.f32 %v773, %v923
        %v925 = vpop.f32.mrf.mxu0
        %926 = vmatprep.mubr.f32.mxu0 0.0
        %927 = vmatmul.mubr.f32.gmra.mxu0 %v803
        %v928 = vpop.f32.mrf.mxu0
        %v929 = vadd.f32 %v774, %v928
        %v930 = vpop.f32.mrf.mxu0
        %931 = vmatprep.mubr.f32.mxu0 0.0
        %932 = vmatmul.mubr.f32.gmra.mxu0 %v806
        %v933 = vpop.f32.mrf.mxu0
        %v934 = vadd.f32 %v775, %v933
        %v935 = vpop.f32.mrf.mxu0
        %936 = vmatprep.mubr.f32.mxu0 0.0
        %937 = vmatmul.mubr.f32.gmra.mxu0 %v809
        %v938 = vpop.f32.mrf.mxu0
        %v939 = vadd.f32 %v776, %v938
        %v940 = vpop.f32.mrf.mxu0
        %941 = vmatprep.mubr.f32.mxu0 0.0
        %942 = vmatmul.mubr.f32.gmra.mxu0 %v812
        %v943 = vpop.f32.mrf.mxu0
        %v944 = vadd.f32 %v777, %v943
        %v945 = vpop.f32.mrf.mxu0
        %946 = vmatprep.mubr.f32.mxu0 0.0
        %947 = vmatmul.mubr.f32.gmra.mxu0 %v815
        %v948 = vpop.f32.mrf.mxu0
        %v949 = vadd.f32 %v778, %v948
        %v950 = vpop.f32.mrf.mxu0
        %951 = vmatprep.mubr.f32.mxu0 0.0
        %952 = vmatmul.mubr.f32.gmra.mxu0 %v818
        %v953 = vpop.f32.mrf.mxu0
        %v954 = vadd.f32 %v779, %v953
        %v955 = vpop.f32.mrf.mxu0
        %956 = vmatprep.mubr.f32.mxu0 0.0
        %957 = vmatmul.mubr.f32.gmra.mxu0 %v821
        %v958 = vpop.f32.mrf.mxu0
        %v959 = vadd.f32 %v780, %v958
        %v960 = vpop.f32.mrf.mxu0
        %961 = vmatprep.mubr.f32.mxu0 0.0
        %962 = vmatmul.mubr.f32.gmra.mxu0 %v824
        %v963 = vpop.f32.mrf.mxu0
        %v964 = vadd.f32 %v781, %v963
        %v965 = vpop.f32.mrf.mxu0
        %966 = vmatprep.mubr.f32.mxu0 0.0
        %967 = vmatmul.mubr.f32.gmra.mxu0 %v827
        %v968 = vpop.f32.mrf.mxu0
        %v969 = vadd.f32 %v782, %v968
        %v970 = vpop.f32.mrf.mxu0
        %971 = vmatprep.mubr.f32.mxu0 0.0
        %972 = vmatmul.mubr.f32.gmra.mxu0 %v830
        %v973 = vpop.f32.mrf.mxu0
        %v974 = vadd.f32 %v783, %v973
        %v975 = vpop.f32.mrf.mxu0
        %976 = vdwg.mxu0
        %v977 = vrcp.pop 6.0
        %v978 = vmul.f32 %v899, %v977
        %v979 = vmul.f32 %v904, %v977
        %v980 = vmul.f32 %v909, %v977
        %v981 = vmul.f32 %v914, %v977
        %v982 = vmul.f32 %v919, %v977
        %v983 = vmul.f32 %v924, %v977
        %v984 = vmul.f32 %v929, %v977
        %v985 = vmul.f32 %v934, %v977
        %v986 = vmul.f32 %v939, %v977
        %v987 = vmul.f32 %v944, %v977
        %v988 = vmul.f32 %v949, %v977
        %v989 = vmul.f32 %v954, %v977
        %v990 = vmul.f32 %v959, %v977
        %v991 = vmul.f32 %v964, %v977
        %v992 = vmul.f32 %v969, %v977
        %v993 = vmul.f32 %v974, %v977
        %v994 = vadd.f32 %v978, 0.5
        %v995 = vadd.f32 %v979, 0.5
        %v996 = vadd.f32 %v980, 0.5
        %v997 = vadd.f32 %v981, 0.5
        %v998 = vadd.f32 %v982, 0.5
        %v999 = vadd.f32 %v983, 0.5
        %v1000 = vadd.f32 %v984, 0.5
        %v1001 = vadd.f32 %v985, 0.5
        %v1002 = vadd.f32 %v986, 0.5
        %v1003 = vadd.f32 %v987, 0.5
        %v1004 = vadd.f32 %v988, 0.5
        %v1005 = vadd.f32 %v989, 0.5
        %v1006 = vadd.f32 %v990, 0.5
        %v1007 = vadd.f32 %v991, 0.5
        %v1008 = vadd.f32 %v992, 0.5
        %v1009 = vadd.f32 %v993, 0.5
        %v1010 = vmax.f32 %v994, 0.0
        %v1011 = vmax.f32 %v995, 0.0
        %v1012 = vmax.f32 %v996, 0.0
        %v1013 = vmax.f32 %v997, 0.0
        %v1014 = vmax.f32 %v998, 0.0
        %v1015 = vmax.f32 %v999, 0.0
        %v1016 = vmax.f32 %v1000, 0.0
        %v1017 = vmax.f32 %v1001, 0.0
        %v1018 = vmax.f32 %v1002, 0.0
        %v1019 = vmax.f32 %v1003, 0.0
        %v1020 = vmax.f32 %v1004, 0.0
        %v1021 = vmax.f32 %v1005, 0.0
        %v1022 = vmax.f32 %v1006, 0.0
        %v1023 = vmax.f32 %v1007, 0.0
        %v1024 = vmax.f32 %v1008, 0.0
        %v1025 = vmax.f32 %v1009, 0.0
        %v1026 = vmin.f32 %v1010, 1.0
        %v1027 = vmin.f32 %v1011, 1.0
        %v1028 = vmin.f32 %v1012, 1.0
        %v1029 = vmin.f32 %v1013, 1.0
        %v1030 = vmin.f32 %v1014, 1.0
        %v1031 = vmin.f32 %v1015, 1.0
        %v1032 = vmin.f32 %v1016, 1.0
        %v1033 = vmin.f32 %v1017, 1.0
        %v1034 = vmin.f32 %v1018, 1.0
        %v1035 = vmin.f32 %v1019, 1.0
        %v1036 = vmin.f32 %v1020, 1.0
        %v1037 = vmin.f32 %v1021, 1.0
        %v1038 = vmin.f32 %v1022, 1.0
        %v1039 = vmin.f32 %v1023, 1.0
        %v1040 = vmin.f32 %v1024, 1.0
        %v1041 = vmin.f32 %v1025, 1.0
        %1043 = vset.pattern.permute.xlu0 0
        %1044 = vperm.xlu0 %1043, %v1026
        %v1045 = vpop.permute.xlu0 %1044
        %1048 = vset.pattern.permute.xlu0 0
        %1049 = vperm.xlu0 %1048, %v1027
        %v1050 = vpop.permute.xlu0 %1049
        %1053 = vset.pattern.permute.xlu0 0
        %1054 = vperm.xlu0 %1053, %v1028
        %v1055 = vpop.permute.xlu0 %1054
        %1058 = vset.pattern.permute.xlu0 0
        %1059 = vperm.xlu0 %1058, %v1029
        %v1060 = vpop.permute.xlu0 %1059
        %1063 = vset.pattern.permute.xlu0 0
        %1064 = vperm.xlu0 %1063, %v1030
        %v1065 = vpop.permute.xlu0 %1064
        %1068 = vset.pattern.permute.xlu0 0
        %1069 = vperm.xlu0 %1068, %v1031
        %v1070 = vpop.permute.xlu0 %1069
        %1073 = vset.pattern.permute.xlu0 0
        %1074 = vperm.xlu0 %1073, %v1032
        %v1075 = vpop.permute.xlu0 %1074
        %1078 = vset.pattern.permute.xlu0 0
        %1079 = vperm.xlu0 %1078, %v1033
        %v1080 = vpop.permute.xlu0 %1079
        %1083 = vset.pattern.permute.xlu0 0
        %1084 = vperm.xlu0 %1083, %v1034
        %v1085 = vpop.permute.xlu0 %1084
        %1088 = vset.pattern.permute.xlu0 0
        %1089 = vperm.xlu0 %1088, %v1035
        %v1090 = vpop.permute.xlu0 %1089
        %1093 = vset.pattern.permute.xlu0 0
        %1094 = vperm.xlu0 %1093, %v1036
        %v1095 = vpop.permute.xlu0 %1094
        %1098 = vset.pattern.permute.xlu0 0
        %1099 = vperm.xlu0 %1098, %v1037
        %v1100 = vpop.permute.xlu0 %1099
        %1103 = vset.pattern.permute.xlu0 0
        %1104 = vperm.xlu0 %1103, %v1038
        %v1105 = vpop.permute.xlu0 %1104
        %1108 = vset.pattern.permute.xlu0 0
        %1109 = vperm.xlu0 %1108, %v1039
        %v1110 = vpop.permute.xlu0 %1109
        %1113 = vset.pattern.permute.xlu0 0
        %1114 = vperm.xlu0 %1113, %v1040
        %v1115 = vpop.permute.xlu0 %1114
        %1118 = vset.pattern.permute.xlu0 0
        %1119 = vperm.xlu0 %1118, %v1041
        %v1120 = vpop.permute.xlu0 %1119
        %v1122 = vmul.f32 %v730, %v1045
        %v1123 = vmul.f32 %v731, %v1050
        %v1124 = vmul.f32 %v732, %v1055
        %v1125 = vmul.f32 %v733, %v1060
        %v1126 = vmul.f32 %v734, %v1065
        %v1127 = vmul.f32 %v735, %v1070
        %v1128 = vmul.f32 %v736, %v1075
        %v1129 = vmul.f32 %v737, %v1080
        %v1130 = vmul.f32 %v738, %v1085
        %v1131 = vmul.f32 %v739, %v1090
        %v1132 = vmul.f32 %v740, %v1095
        %v1133 = vmul.f32 %v741, %v1100
        %v1134 = vmul.f32 %v742, %v1105
        %v1135 = vmul.f32 %v743, %v1110
        %v1136 = vmul.f32 %v744, %v1115
        %v1137 = vmul.f32 %v745, %v1120
        %v1138 = vpack.c.bf16 %v1123, %v1122
        %v1139 = vpack.c.bf16 %v1125, %v1124
        %v1140 = vpack.c.bf16 %v1127, %v1126
        %v1141 = vpack.c.bf16 %v1129, %v1128
        %v1142 = vpack.c.bf16 %v1131, %v1130
        %v1143 = vpack.c.bf16 %v1133, %v1132
        %v1144 = vpack.c.bf16 %v1135, %v1134
        %v1145 = vpack.c.bf16 %v1137, %v1136
        %v1146 = vld [vmem:[%s8] sm:$0x3]
        %1147 = vmatprep.subr.bf16.mxu0 0
        %1148 = vmatpush1.bf16.msra.mxu0 %v1145
        %1149 = vmatprep.subr.bf16.mxu0 0
        %1150 = vmatpush1.bf16.msra.mxu0 %v1144
        %1151 = vmatprep.subr.bf16.mxu0 0
        %1152 = vmatpush1.bf16.msra.mxu0 %v1143
        %1153 = vmatprep.subr.bf16.mxu0 0
        %1154 = vmatpush1.bf16.msra.mxu0 %v1142
        %1155 = vmatprep.subr.bf16.mxu0 0
        %1156 = vmatpush1.bf16.msra.mxu0 %v1141
        %1157 = vmatprep.subr.bf16.mxu0 0
        %1158 = vmatpush1.bf16.msra.mxu0 %v1140
        %1159 = vmatprep.subr.bf16.mxu0 0
        %1160 = vmatpush1.bf16.msra.mxu0 %v1139
        %1161 = vmatprep.subr.bf16.mxu0 0
        %1162 = vmatpush1.bf16.msra.mxu0 %v1138
        %1163 = vmatprep.subr.bf16.mxu0 0
        %1164 = vmatpush2.bf16.msra.mxu0 0
        %1165 = vmatprep.subr.bf16.mxu0 0
        %1166 = vmatpush2.bf16.msra.mxu0 0
        %1167 = vmatprep.subr.bf16.mxu0 0
        %1168 = vmatpush2.bf16.msra.mxu0 0
        %1169 = vmatprep.subr.bf16.mxu0 0
        %1170 = vmatpush2.bf16.msra.mxu0 0
        %1171 = vmatprep.subr.bf16.mxu0 0
        %1172 = vmatpush2.bf16.msra.mxu0 0
        %1173 = vmatprep.subr.bf16.mxu0 0
        %1174 = vmatpush2.bf16.msra.mxu0 0
        %1175 = vmatprep.subr.bf16.mxu0 0
        %1176 = vmatpush2.bf16.msra.mxu0 0
        %1177 = vmatprep.subr.bf16.mxu0 0
        %1178 = vmatpush2.bf16.msra.mxu0 0
        %1179 = vmatprep.mubr.bf16.mxu0 0
        %1180 = vmatmul.mubr.bf16.gmra.mxu0 %v1146
        %v1181 = vpop.f32.mrf.mxu0
        %v1182 = vadd.f32 0.0, %v1181
        %v1183 = vpop.f32.mrf.mxu0
        %v1184 = vpop.f32.mrf.mxu0
        %v1185 = vpop.f32.mrf.mxu0
        %1186 = vdwg.mxu0
        %v1188 = vrot.slane %v1182, 4
        %1189 = vrot.lane.b32.xlu0 %v1188, 120
        %v1190 = vpop.permute.xlu0 %1189
        %1192 = vrot.lane.b32.xlu0 %v1182, 112
        %v1193 = vpop.permute.xlu0 %1192
        %1195 = vrot.lane.b32.xlu0 %v1188, 104
        %v1196 = vpop.permute.xlu0 %1195
        %1198 = vrot.lane.b32.xlu0 %v1182, 96
        %v1199 = vpop.permute.xlu0 %1198
        %1201 = vrot.lane.b32.xlu0 %v1188, 88
        %v1202 = vpop.permute.xlu0 %1201
        %1204 = vrot.lane.b32.xlu0 %v1182, 80
        %v1205 = vpop.permute.xlu0 %1204
        %1207 = vrot.lane.b32.xlu0 %v1188, 72
        %v1208 = vpop.permute.xlu0 %1207
        %v1210 = vsel %vm613, %v1182, %v1190
        %v1211 = vsel %vm613, %v1193, %v1196
        %v1212 = vsel %vm613, %v1199, %v1202
        %v1213 = vsel %vm613, %v1205, %v1208
        %v1214 = vpack.c.bf16 %v1211, %v1210
        %v1215 = vpack.c.bf16 %v1213, %v1212
        %v1216 = vld [vmem:[%s2] sm:$0xf]
        %v1218 = vsel %vm588, %v1214, 0
        %v1221 = vsel %vm588, %v1215, 0
        %v1224 = vsel %vm613, %v1216, 0
        %1226 = vmatprep.subr.bf16.mxu0 0
        %1227 = vmatpush1.bf16.msra.mxu0 0
        %1228 = vmatprep.subr.bf16.mxu0 0
        %1229 = vmatpush1.bf16.msra.mxu0 0
        %1230 = vmatprep.subr.bf16.mxu0 0
        %1231 = vmatpush1.bf16.msra.mxu0 0
        %1232 = vmatprep.subr.bf16.mxu0 0
        %1233 = vmatpush1.bf16.msra.mxu0 0
        %1234 = vmatprep.subr.bf16.mxu0 0
        %1235 = vmatpush1.bf16.msra.mxu0 0
        %1236 = vmatprep.subr.bf16.mxu0 0
        %1237 = vmatpush1.bf16.msra.mxu0 0
        %1238 = vmatprep.subr.bf16.mxu0 0
        %1239 = vmatpush1.bf16.msra.mxu0 0
        %1240 = vmatprep.subr.bf16.mxu0 0
        %1241 = vmatpush1.bf16.msra.mxu0 %v1224
        %1242 = vmatprep.subr.bf16.mxu0 0
        %1243 = vmatpush2.bf16.msra.mxu0 0
        %1244 = vmatprep.subr.bf16.mxu0 0
        %1245 = vmatpush2.bf16.msra.mxu0 0
        %1246 = vmatprep.subr.bf16.mxu0 0
        %1247 = vmatpush2.bf16.msra.mxu0 0
        %1248 = vmatprep.subr.bf16.mxu0 0
        %1249 = vmatpush2.bf16.msra.mxu0 0
        %1250 = vmatprep.subr.bf16.mxu0 0
        %1251 = vmatpush2.bf16.msra.mxu0 0
        %1252 = vmatprep.subr.bf16.mxu0 0
        %1253 = vmatpush2.bf16.msra.mxu0 0
        %1254 = vmatprep.subr.bf16.mxu0 0
        %1255 = vmatpush2.bf16.msra.mxu0 0
        %1256 = vmatprep.subr.bf16.mxu0 0
        %1257 = vmatpush2.bf16.msra.mxu0 0
        %1258 = vmatprep.mubr.bf16.mxu0 0
        %1259 = vmatmul.mubr.bf16.gmra.mxu0 %v1218
        %v1260 = vpop.f32.mrf.mxu0
        %v1261 = vadd.f32 0.0, %v1260
        %v1262 = vpop.f32.mrf.mxu0
        %v1263 = vpop.f32.mrf.mxu0
        %v1264 = vadd.f32 0.0, %v1263
        %v1265 = vpop.f32.mrf.mxu0
        %1266 = vmatprep.mubr.bf16.mxu0 0
        %1267 = vmatmul.mubr.bf16.gmra.mxu0 %v1221
        %v1268 = vpop.f32.mrf.mxu0
        %v1269 = vadd.f32 0.0, %v1268
        %v1270 = vpop.f32.mrf.mxu0
        %v1271 = vpop.f32.mrf.mxu0
        %v1272 = vadd.f32 0.0, %v1271
        %v1273 = vpop.f32.mrf.mxu0
        %1274 = vdwg.mxu0
        %v1275 = vld [vmem:[%s3] sm:$0xf]
        %v1276 = vld [vmem:[%s3 + $0x4] sm:$0xf]
        %v1277 = vld [vmem:[%s3 + $0x8] sm:$0xf]
        %v1278 = vld [vmem:[%s3 + $0xc] sm:$0xf]
        %v1279 = vld [vmem:[%s3 + $0x10] sm:$0xf]
        %v1280 = vld [vmem:[%s3 + $0x14] sm:$0xf]
        %v1281 = vld [vmem:[%s3 + $0x18] sm:$0xf]
        %v1282 = vld [vmem:[%s3 + $0x1c] sm:$0xf]
        %v1283 = vpack.c.bf16 %v1264, %v1261
        %v1284 = vpack.c.bf16 %v1272, %v1269
        %v1293 = vunpack.c.l.b16 %v1275
        %v1294 = vunpack.c.l.b16 %v1276
        %v1295 = vunpack.c.l.b16 %v1277
        %v1296 = vunpack.c.l.b16 %v1278
        %v1297 = vunpack.c.l.b16 %v1279
        %v1298 = vunpack.c.l.b16 %v1280
        %v1299 = vunpack.c.l.b16 %v1281
        %v1300 = vunpack.c.l.b16 %v1282
        %v1301 = vpack.c.b16 %v1294, %v1293
        %v1302 = vpack.c.b16 %v1296, %v1295
        %v1303 = vpack.c.b16 %v1298, %v1297
        %v1304 = vpack.c.b16 %v1300, %v1299
        %vm1305 = vcmask 261120
        %v1307 = vsel %vm1305, %v1301, 0
        %v1310 = vsel %vm1305, %v1302, 0
        %v1313 = vsel %vm1305, %v1303, 0
        %v1316 = vsel %vm1305, %v1304, 0
        %1318 = vmatprep.subr.bf16.mxu0 0
        %1319 = vmatpush1.bf16.msra.mxu0 0
        %1320 = vmatprep.subr.bf16.mxu0 0
        %1321 = vmatpush1.bf16.msra.mxu0 0
        %1322 = vmatprep.subr.bf16.mxu0 0
        %1323 = vmatpush1.bf16.msra.mxu0 0
        %1324 = vmatprep.subr.bf16.mxu0 0
        %1325 = vmatpush1.bf16.msra.mxu0 0
        %1326 = vmatprep.subr.bf16.mxu0 0
        %1327 = vmatpush1.bf16.msra.mxu0 0
        %1328 = vmatprep.subr.bf16.mxu0 0
        %1329 = vmatpush1.bf16.msra.mxu0 0
        %1330 = vmatprep.subr.bf16.mxu0 0
        %1331 = vmatpush1.bf16.msra.mxu0 %v1284
        %1332 = vmatprep.subr.bf16.mxu0 0
        %1333 = vmatpush1.bf16.msra.mxu0 %v1283
        %1334 = vmatprep.subr.bf16.mxu0 0
        %1335 = vmatpush2.bf16.msra.mxu0 0
        %1336 = vmatprep.subr.bf16.mxu0 0
        %1337 = vmatpush2.bf16.msra.mxu0 0
        %1338 = vmatprep.subr.bf16.mxu0 0
        %1339 = vmatpush2.bf16.msra.mxu0 0
        %1340 = vmatprep.subr.bf16.mxu0 0
        %1341 = vmatpush2.bf16.msra.mxu0 0
        %1342 = vmatprep.subr.bf16.mxu0 0
        %1343 = vmatpush2.bf16.msra.mxu0 0
        %1344 = vmatprep.subr.bf16.mxu0 0
        %1345 = vmatpush2.bf16.msra.mxu0 0
        %1346 = vmatprep.subr.bf16.mxu0 0
        %1347 = vmatpush2.bf16.msra.mxu0 0
        %1348 = vmatprep.subr.bf16.mxu0 0
        %1349 = vmatpush2.bf16.msra.mxu0 0
        %1350 = vmatprep.mubr.bf16.mxu0 0
        %1351 = vmatmul.mubr.bf16.gmra.mxu0 %v1307
        %v1352 = vpop.f32.mrf.mxu0
        %v1353 = vadd.f32 0.0, %v1352
        %v1354 = vpop.f32.mrf.mxu0
        %v1355 = vpop.f32.mrf.mxu0
        %v1356 = vadd.f32 0.0, %v1355
        %v1357 = vpop.f32.mrf.mxu0
        %1358 = vmatprep.mubr.bf16.mxu0 0
        %1359 = vmatmul.mubr.bf16.gmra.mxu0 %v1310
        %v1360 = vpop.f32.mrf.mxu0
        %v1361 = vadd.f32 0.0, %v1360
        %v1362 = vpop.f32.mrf.mxu0
        %v1363 = vpop.f32.mrf.mxu0
        %v1364 = vadd.f32 0.0, %v1363
        %v1365 = vpop.f32.mrf.mxu0
        %1366 = vmatprep.mubr.bf16.mxu0 0
        %1367 = vmatmul.mubr.bf16.gmra.mxu0 %v1313
        %v1368 = vpop.f32.mrf.mxu0
        %v1369 = vadd.f32 0.0, %v1368
        %v1370 = vpop.f32.mrf.mxu0
        %v1371 = vpop.f32.mrf.mxu0
        %v1372 = vadd.f32 0.0, %v1371
        %v1373 = vpop.f32.mrf.mxu0
        %1374 = vmatprep.mubr.bf16.mxu0 0
        %1375 = vmatmul.mubr.bf16.gmra.mxu0 %v1316
        %v1376 = vpop.f32.mrf.mxu0
        %v1377 = vadd.f32 0.0, %v1376
        %v1378 = vpop.f32.mrf.mxu0
        %v1379 = vpop.f32.mrf.mxu0
        %v1380 = vadd.f32 0.0, %v1379
        %v1381 = vpop.f32.mrf.mxu0
        %1382 = vdwg.mxu0
        %v1384 = vrot.slane %v1353, 4
        %1385 = vrot.lane.b32.xlu0 %v1384, 16
        %v1386 = vpop.permute.xlu0 %1385
        %1389 = vrot.lane.b32.xlu0 %v1356, 32
        %v1390 = vpop.permute.xlu0 %1389
        %v1392 = vrot.slane %v1356, 4
        %1393 = vrot.lane.b32.xlu0 %v1392, 48
        %v1394 = vpop.permute.xlu0 %1393
        %1397 = vrot.lane.b32.xlu0 %v1361, 64
        %v1398 = vpop.permute.xlu0 %1397
        %v1400 = vrot.slane %v1361, 4
        %1401 = vrot.lane.b32.xlu0 %v1400, 80
        %v1402 = vpop.permute.xlu0 %1401
        %1405 = vrot.lane.b32.xlu0 %v1364, 96
        %v1406 = vpop.permute.xlu0 %1405
        %v1408 = vrot.slane %v1364, 4
        %1409 = vrot.lane.b32.xlu0 %v1408, 112
        %v1410 = vpop.permute.xlu0 %1409
        %v1413 = vrot.slane %v1369, 4
        %1414 = vrot.lane.b32.xlu0 %v1413, 16
        %v1415 = vpop.permute.xlu0 %1414
        %1418 = vrot.lane.b32.xlu0 %v1372, 32
        %v1419 = vpop.permute.xlu0 %1418
        %v1421 = vrot.slane %v1372, 4
        %1422 = vrot.lane.b32.xlu0 %v1421, 48
        %v1423 = vpop.permute.xlu0 %1422
        %1426 = vrot.lane.b32.xlu0 %v1377, 64
        %v1427 = vpop.permute.xlu0 %1426
        %v1429 = vrot.slane %v1377, 4
        %1430 = vrot.lane.b32.xlu0 %v1429, 80
        %v1431 = vpop.permute.xlu0 %1430
        %1434 = vrot.lane.b32.xlu0 %v1380, 96
        %v1435 = vpop.permute.xlu0 %1434
        %v1437 = vrot.slane %v1380, 4
        %1438 = vrot.lane.b32.xlu0 %v1437, 112
        %v1439 = vpop.permute.xlu0 %1438
        %vm1441 = vcmask 130048
        %v1442 = vsel %vm1441, %v1353, %v1386
        %v1443 = vsel %vm1305, %v1442, %v1390
        %vm1444 = vcmask 392192
        %v1445 = vsel %vm1444, %v1443, %v1394
        %v1446 = vsel %vm746, %v1445, %v1398
        %vm1447 = vcmask 654336
        %v1448 = vsel %vm1447, %v1446, %v1402
        %vm1449 = vcmask 785408
        %v1450 = vsel %vm1449, %v1448, %v1406
        %vm1451 = vcmask 916480
        %v1452 = vsel %vm1451, %v1450, %v1410
        %v1453 = vsel %vm1441, %v1369, %v1415
        %v1454 = vsel %vm1305, %v1453, %v1419
        %v1455 = vsel %vm1444, %v1454, %v1423
        %v1456 = vsel %vm746, %v1455, %v1427
        %v1457 = vsel %vm1447, %v1456, %v1431
        %v1458 = vsel %vm1449, %v1457, %v1435
        %v1459 = vsel %vm1451, %v1458, %v1439
        %v1460 = vld [vmem:[%s9] sm:$0xf]
        %1462 = vset.pattern.permute.xlu0 0
        %1463 = vperm.xlu0 %1462, %v1460
        %v1464 = vpop.permute.xlu0 %1463
        %v1466 = vadd.f32 %v1452, %v1464
        %v1467 = vadd.f32 %v1459, %v1464
        %v1468 = vld [vmem:[%s10] sm:$0x3]
        %v1469 = vld [vmem:[%s11] sm:$0xf]
        %1471 = vset.pattern.permute.xlu0 0
        %1472 = vperm.xlu0 %1471, %v1469
        %v1473 = vpop.permute.xlu0 %1472
        %v1476 = vsel %vm588, %v1468, 0
        %v1479 = vsel %vm613, %v434, 0
        %v1482 = vsel %vm613, %v435, 0
        %1484 = vmatprep.subr.bf16.mxu0 0
        %1485 = vmatpush1.bf16.msra.mxu0 0
        %1486 = vmatprep.subr.bf16.mxu0 0
        %1487 = vmatpush1.bf16.msra.mxu0 0
        %1488 = vmatprep.subr.bf16.mxu0 0
        %1489 = vmatpush1.bf16.msra.mxu0 0
        %1490 = vmatprep.subr.bf16.mxu0 0
        %1491 = vmatpush1.bf16.msra.mxu0 0
        %1492 = vmatprep.subr.bf16.mxu0 0
        %1493 = vmatpush1.bf16.msra.mxu0 0
        %1494 = vmatprep.subr.bf16.mxu0 0
        %1495 = vmatpush1.bf16.msra.mxu0 0
        %1496 = vmatprep.subr.bf16.mxu0 0
        %1497 = vmatpush1.bf16.msra.mxu0 0
        %1498 = vmatprep.subr.bf16.mxu0 %v1482
        %1499 = vmatpush1.bf16.msra.mxu0 %v1479
        %1500 = vmatprep.subr.bf16.mxu0 0
        %1501 = vmatpush2.bf16.msra.mxu0 0
        %1502 = vmatprep.subr.bf16.mxu0 0
        %1503 = vmatpush2.bf16.msra.mxu0 0
        %1504 = vmatprep.subr.bf16.mxu0 0
        %1505 = vmatpush2.bf16.msra.mxu0 0
        %1506 = vmatprep.subr.bf16.mxu0 0
        %1507 = vmatpush2.bf16.msra.mxu0 0
        %1508 = vmatprep.subr.bf16.mxu0 0
        %1509 = vmatpush2.bf16.msra.mxu0 0
        %1510 = vmatprep.subr.bf16.mxu0 0
        %1511 = vmatpush2.bf16.msra.mxu0 0
        %1512 = vmatprep.subr.bf16.mxu0 0
        %1513 = vmatpush2.bf16.msra.mxu0 0
        %1514 = vmatprep.subr.bf16.mxu0 0
        %1515 = vmatpush2.bf16.msra.mxu0 0
        %1516 = vmatprep.mubr.bf16.mxu0 0
        %1517 = vmatmul.mubr.bf16.gmra.mxu0 %v1476
        %v1518 = vpop.f32.mrf.mxu0
        %v1519 = vadd.f32 %v1473, %v1518
        %v1520 = vpop.f32.mrf.mxu0
        %v1521 = vadd.f32 %v1473, %v1520
        %v1522 = vpop.f32.mrf.mxu0
        %v1523 = vpop.f32.mrf.mxu0
        %1524 = vdwg.mxu0
        %v1527 = vrot.slane %v1519, 4
        %v1528 = vrot.slane %v1521, 4
        %v1531 = vsel %vm613, %v1466, %v1527
        %v1532 = vsel %vm613, %v1467, %v1528
        %1533 = vst [vmem:[%s419] sm:$0xff] %v1531
        %1534 = vst [vmem:[%s419 + $0x8] sm:$0xff] %v1532
        %s1535 = sand.u32 %s296, 1
        %s1536 = scalar_lea.sflag [#allocation3], %s1535
        %s1537 = sand.u32 %s296, 1
        %s1538 = smul.addr %s1537, 16
        %s1539 = scalar_lea.vmem [#allocation2], %s1538
        // Predicated region
        $region69: #{tpu_custom_call.1} parent=67 // pred_check
          %p1540 = pneg %p306
        $region70: #{tpu_custom_call.1} parent=67 // pred_check_branch
          %1542 = sbr.rel (%p1540) target = $region72
        $region71: #{tpu_custom_call.1} parent=67 // pred_region
          %s1544 = ssub.s32 256, 256
          %1545 = vsyncadd %s1536, %s1544
          %s1546 = smul.addr %s26, 2
          %s1547 = smul.addr %s1546, 128
          %s1548 = scalar_lea.hbm %s12, %s1547
          %s1550 = sshll.u32 %s1539, 4
          %s1551 = int_to_ptr.vmem [resolvable:$true] %s1550
          %1553 = dma.vmem_to_hbm [thread:$0]  %s1551, 256, %s1548, %s1536
        $region72: #{tpu_custom_call.1} parent=67 // pred_fallthru
          _
      $region68: #{tpu_custom_call.1} parent=5 // pred_fallthru
        _
      %p1554 = scmp.le.s32.totalorder 2, %s21
      // Predicated region
      $region73: #{tpu_custom_call.1} parent=5 // pred_check
        %p1555 = pneg %p1554
      $region74: #{tpu_custom_call.1} parent=5 // pred_check_branch
        %1557 = sbr.rel (%p1555) target = $region76
      $region75: #{tpu_custom_call.1} parent=5 // pred_region
        %s1558 = ssub.s32 %s21, 2
        // Predicated region
        $region77: #{tpu_custom_call.1} parent=75 // pred_check
          %p1559 = pneg %p312
        $region78: #{tpu_custom_call.1} parent=75 // pred_check_branch
          %1561 = sbr.rel (%p1559) target = $region80
        $region79: #{tpu_custom_call.1} parent=75 // pred_region
          %s1562 = sand.u32 %s297, 1
          %s1563 = scalar_lea.sflag [#allocation3], %s1562
          %s1564 = sand.u32 %s297, 1
          %s1565 = smul.addr %s1564, 16
          %s1566 = scalar_lea.vmem [#allocation2], %s1565
          %1567 = dma.done %s1563, 256
        $region80: #{tpu_custom_call.1} parent=75 // pred_fallthru
          _
      $region76: #{tpu_custom_call.1} parent=5 // pred_fallthru
        _
    $region6: #{tpu_custom_call.1} parent=1 // loop_footer
      %s25 = sadd.s32 1, %s21
    $region7: #{tpu_custom_call.1} parent=1 // loop_footer_branch
      %20 = sbr.rel target = $region3
    $region8: #{tpu_custom_call.1} parent=1 // loop_exit
      _
    %1568 = vsyncpa [#allocation3], 1
    %s1569 = scalar_lea.sflag [#allocation3], 1
    %1570 = vsyncpa %s1569, 1

</llo_original>
